<compile_context>
chip_gen: v6e
topology: v6e:2x2x1
jax: 0.10.0
libtpu: 0.0.40
codegen_flags: <defaults>
</compile_context>

<pallas_src>
import functools

import jax
import jax.numpy as jnp
from jax.experimental import pallas as pl
from jax.experimental.pallas import tpu as pltpu

EMBEDDING_SIZE = 2 ** 10  # fixed by the PyTorch module


def _mha_kernel(x_ref, w_ref, o_ref, *, num_head, head_size):
    # x_ref : (B, T, C)                  whole input, resident in VMEM
    # w_ref : (C, 3*num_head*head_size)  pre-packed weights [q_h0..|k_h0..|v_h0..]
    # o_ref : (B, T, num_head*head_size) concatenated head outputs
    nh, H = num_head, head_size
    B, T, C = x_ref.shape
    n_out = nh * H

    # Single fused QKV projection, flattened to ONE (B*T, C) @ (C, 3*nh*H) MXU chain.
    x2 = x_ref[...].reshape(B * T, C)
    qkv = jnp.dot(x2, w_ref[...], preferred_element_type=jnp.float32)
    qkv = qkv.reshape(B, T, 3 * n_out)

    scale = jnp.float32(H) ** 0.5  # NOTE: multiply, matching the reference module.

    for h in range(nh):  # static unroll, nh is tiny
        q = qkv[:, :, h * H:(h + 1) * H]                          # (B,T,H)
        k = qkv[:, :, n_out + h * H:n_out + (h + 1) * H]          # (B,T,H)
        v = qkv[:, :, 2 * n_out + h * H:2 * n_out + (h + 1) * H]  # (B,T,H)

        # scores: (B, T, T)
        s = jnp.einsum('btd,bsd->bts', q, k,
                       preferred_element_type=jnp.float32) * scale

        # F.softmax with no `dim` on a 3-D tensor -> legacy rule: softmax over dim 0.
        m = jnp.max(s, axis=0, keepdims=True)
        e = jnp.exp(s - m)
        denom = jnp.sum(e, axis=0, keepdims=True)
        wgt = e * pl.reciprocal(denom, approx=False)

        # dropout(0.2) == identity in eval mode.

        # Store this head directly into its output lane slice (no lane concat).
        o_ref[:, :, h * H:(h + 1) * H] = jnp.einsum(
            'bts,bsd->btd', wgt, v,
            preferred_element_type=jnp.float32).astype(o_ref.dtype)


def pack_qkv_weights(wq, wk, wv):
    """One-time weight repack (call at init time, NOT per forward).

    wq/wk/wv: (num_head, head_size, C) -> (C, 3*num_head*head_size), column order
    [q_h0..q_hN | k_h0.. | v_h0..], so the kernel does a plain (M,K)@(K,N) matmul.
    """
    num_head, head_size, C = wq.shape
    n3 = 3 * num_head * head_size
    return jnp.concatenate([wq, wk, wv], axis=0).reshape(n3, C).T


def multi_head_attention(x, w_packed, *, num_head, head_size):
    """x: (B,T,C); w_packed: (C, 3*num_head*head_size) from pack_qkv_weights.

    Returns (B, T, num_head*head_size) == torch.cat([head(x) ...], dim=-1).
    """
    B, T, C = x.shape
    n_out = num_head * head_size

    kernel = functools.partial(_mha_kernel, num_head=num_head, head_size=head_size)

    return pl.pallas_call(
        kernel,
        out_shape=jax.ShapeDtypeStruct((B, T, n_out), x.dtype),
        in_specs=[
            pl.BlockSpec(memory_space=pltpu.MemorySpace.VMEM),
            pl.BlockSpec(memory_space=pltpu.MemorySpace.VMEM),
        ],
        out_specs=pl.BlockSpec(memory_space=pltpu.MemorySpace.VMEM),
    )(x, w_packed)


def _reference(x, wq, wk, wv):
    """Pure-JAX reference mirroring the PyTorch forward (eval mode)."""
    heads = []
    for h in range(wq.shape[0]):
        q = x @ wq[h].T
        k = x @ wk[h].T
        v = x @ wv[h].T
        s = jnp.einsum('btd,bsd->bts', q, k) * (k.shape[-1] ** 0.5)
        w = jax.nn.softmax(s, axis=0)  # legacy F.softmax dim for 3-D tensors
        heads.append(jnp.einsum('bts,bsd->btd', w, v))
    return jnp.concatenate(heads, axis=-1)


if __name__ == "__main__":
    B, T, C = 2, 8, EMBEDDING_SIZE
    num_head, head_size = 4, 16

    key = jax.random.PRNGKey(0)
    kx, kq, kk, kv = jax.random.split(key, 4)

    x = jax.random.normal(kx, (B, T, C), dtype=jnp.float32)
    # nn.Linear default init: U(-1/sqrt(in_features), 1/sqrt(in_features))
    bound = 1.0 / (C ** 0.5)
    wq = jax.random.uniform(kq, (num_head, head_size, C), jnp.float32, -bound, bound)
    wk = jax.random.uniform(kk, (num_head, head_size, C), jnp.float32, -bound, bound)
    wv = jax.random.uniform(kv, (num_head, head_size, C), jnp.float32, -bound, bound)

    # Init-time pack (hoisted out of the per-call path).
    w_packed = jax.block_until_ready(pack_qkv_weights(wq, wk, wv))

    out = jax.block_until_ready(
        multi_head_attention(x, w_packed, num_head=num_head, head_size=head_size))
    ref = _reference(x, wq, wk, wv)

    assert out.shape == (B, T, num_head * head_size), out.shape
    assert jnp.allclose(out, ref, atol=1e-4, rtol=1e-4), float(jnp.max(jnp.abs(out - ref)))

    print("KERNEL_OK")
</pallas_src>

<mosaic_0001>
module attributes {stable_mosaic.version = 11 : i64} {
  func.func @_mha_kernel(%arg0: memref<2x8x1024xf32, #tpu.memory_space<vmem>>, %arg1: memref<1024x192xf32, #tpu.memory_space<vmem>>, %arg2: memref<2x8x64xf32, #tpu.memory_space<vmem>>) attributes {dimension_semantics = [], scalar_prefetch = 0 : i64, scratch_operands = 0 : i64, tpu.core_type = #tpu.core_type<tc>} {
    %c0 = arith.constant 0 : index
    %c0_0 = arith.constant 0 : index
    %c0_1 = arith.constant 0 : index
    %0 = vector.load %arg0[%c0, %c0_0, %c0_1] : memref<2x8x1024xf32, #tpu.memory_space<vmem>>, vector<2x8x1024xf32>
    %1 = vector.shape_cast %0 : vector<2x8x1024xf32> to vector<16x1024xf32>
    %c0_2 = arith.constant 0 : index
    %c0_3 = arith.constant 0 : index
    %2 = vector.load %arg1[%c0_2, %c0_3] : memref<1024x192xf32, #tpu.memory_space<vmem>>, vector<1024x192xf32>
    %cst = arith.constant dense<0.000000e+00> : vector<16x192xf32>
    %3 = tpu.matmul %1, %2, %cst {dimension_numbers = #tpu.dot_dimension_numbers<[1], [0], [0], [1], [0, 0, 1, 1], [], []>} : vector<16x1024xf32>, vector<1024x192xf32>, vector<16x192xf32> -> vector<16x192xf32>
    %4 = vector.shape_cast %3 : vector<16x192xf32> to vector<2x8x192xf32>
    %cst_4 = arith.constant 1.600000e+01 : f32
    %cst_5 = arith.constant 5.000000e-01 : f32
    %5 = math.powf %cst_4, %cst_5 : f32
    %6 = vector.extract_strided_slice %4 {offsets = [0, 0, 0], sizes = [2, 8, 16], strides = [1, 1, 1]} : vector<2x8x192xf32> to vector<2x8x16xf32>
    %7 = vector.extract_strided_slice %4 {offsets = [0, 0, 64], sizes = [2, 8, 16], strides = [1, 1, 1]} : vector<2x8x192xf32> to vector<2x8x16xf32>
    %8 = vector.extract_strided_slice %4 {offsets = [0, 0, 128], sizes = [2, 8, 16], strides = [1, 1, 1]} : vector<2x8x192xf32> to vector<2x8x16xf32>
    "tpu.trace_start"() <{level = 10 : i32, message = "btd,bsd->bts"}> : () -> ()
    %cst_6 = arith.constant dense<0.000000e+00> : vector<2x8x8xf32>
    %9 = tpu.matmul %6, %7, %cst_6 {dimension_numbers = #tpu.dot_dimension_numbers<[2], [2], [1], [1], [0, 0, 0, 1, 1, 1], [0], [0]>} : vector<2x8x16xf32>, vector<2x8x16xf32>, vector<2x8x8xf32> -> vector<2x8x8xf32>
    "tpu.trace_stop"() : () -> ()
    %10 = vector.broadcast %5 : f32 to vector<2x8x8xf32>
    %11 = arith.mulf %9, %10 : vector<2x8x8xf32>
    %cst_7 = arith.constant dense<0xFF800000> : vector<8x8xf32>
    %12 = vector.multi_reduction <maximumf>, %11, %cst_7 [0] : vector<2x8x8xf32> to vector<8x8xf32>
    %13 = vector.shape_cast %12 : vector<8x8xf32> to vector<1x8x8xf32>
    %14 = vector.broadcast %13 : vector<1x8x8xf32> to vector<2x8x8xf32>
    %15 = arith.subf %11, %14 : vector<2x8x8xf32>
    %16 = math.exp %15 : vector<2x8x8xf32>
    %cst_8 = arith.constant dense<0.000000e+00> : vector<8x8xf32>
    %17 = vector.multi_reduction <add>, %16, %cst_8 [0] : vector<2x8x8xf32> to vector<8x8xf32>
    %18 = vector.shape_cast %17 : vector<8x8xf32> to vector<1x8x8xf32>
    %19 = tpu.reciprocal %18 : vector<1x8x8xf32> -> vector<1x8x8xf32>
    %20 = vector.broadcast %19 : vector<1x8x8xf32> to vector<2x8x8xf32>
    %21 = arith.mulf %16, %20 : vector<2x8x8xf32>
    "tpu.trace_start"() <{level = 10 : i32, message = "bts,bsd->btd"}> : () -> ()
    %cst_9 = arith.constant dense<0.000000e+00> : vector<2x8x16xf32>
    %22 = tpu.matmul %21, %8, %cst_9 {dimension_numbers = #tpu.dot_dimension_numbers<[2], [1], [1], [2], [0, 0, 0, 1, 1, 2], [0], [0]>} : vector<2x8x8xf32>, vector<2x8x16xf32>, vector<2x8x16xf32> -> vector<2x8x16xf32>
    "tpu.trace_stop"() : () -> ()
    %c0_10 = arith.constant 0 : index
    %c0_11 = arith.constant 0 : index
    %c0_12 = arith.constant 0 : index
    %23 = vector.load %arg2[%c0_10, %c0_11, %c0_12] : memref<2x8x64xf32, #tpu.memory_space<vmem>>, vector<2x8x16xf32>
    tpu.vector_store %arg2[%c0_10, %c0_11, %c0_12], %22 {strides = array<i32>} : memref<2x8x64xf32, #tpu.memory_space<vmem>>, vector<2x8x16xf32>,
    %24 = vector.extract_strided_slice %4 {offsets = [0, 0, 16], sizes = [2, 8, 16], strides = [1, 1, 1]} : vector<2x8x192xf32> to vector<2x8x16xf32>
    %25 = vector.extract_strided_slice %4 {offsets = [0, 0, 80], sizes = [2, 8, 16], strides = [1, 1, 1]} : vector<2x8x192xf32> to vector<2x8x16xf32>
    %26 = vector.extract_strided_slice %4 {offsets = [0, 0, 144], sizes = [2, 8, 16], strides = [1, 1, 1]} : vector<2x8x192xf32> to vector<2x8x16xf32>
    "tpu.trace_start"() <{level = 10 : i32, message = "btd,bsd->bts"}> : () -> ()
    %cst_13 = arith.constant dense<0.000000e+00> : vector<2x8x8xf32>
    %27 = tpu.matmul %24, %25, %cst_13 {dimension_numbers = #tpu.dot_dimension_numbers<[2], [2], [1], [1], [0, 0, 0, 1, 1, 1], [0], [0]>} : vector<2x8x16xf32>, vector<2x8x16xf32>, vector<2x8x8xf32> -> vector<2x8x8xf32>
    "tpu.trace_stop"() : () -> ()
    %28 = vector.broadcast %5 : f32 to vector<2x8x8xf32>
    %29 = arith.mulf %27, %28 : vector<2x8x8xf32>
    %cst_14 = arith.constant dense<0xFF800000> : vector<8x8xf32>
    %30 = vector.multi_reduction <maximumf>, %29, %cst_14 [0] : vector<2x8x8xf32> to vector<8x8xf32>
    %31 = vector.shape_cast %30 : vector<8x8xf32> to vector<1x8x8xf32>
    %32 = vector.broadcast %31 : vector<1x8x8xf32> to vector<2x8x8xf32>
    %33 = arith.subf %29, %32 : vector<2x8x8xf32>
    %34 = math.exp %33 : vector<2x8x8xf32>
    %cst_15 = arith.constant dense<0.000000e+00> : vector<8x8xf32>
    %35 = vector.multi_reduction <add>, %34, %cst_15 [0] : vector<2x8x8xf32> to vector<8x8xf32>
    %36 = vector.shape_cast %35 : vector<8x8xf32> to vector<1x8x8xf32>
    %37 = tpu.reciprocal %36 : vector<1x8x8xf32> -> vector<1x8x8xf32>
    %38 = vector.broadcast %37 : vector<1x8x8xf32> to vector<2x8x8xf32>
    %39 = arith.mulf %34, %38 : vector<2x8x8xf32>
    "tpu.trace_start"() <{level = 10 : i32, message = "bts,bsd->btd"}> : () -> ()
    %cst_16 = arith.constant dense<0.000000e+00> : vector<2x8x16xf32>
    %40 = tpu.matmul %39, %26, %cst_16 {dimension_numbers = #tpu.dot_dimension_numbers<[2], [1], [1], [2], [0, 0, 0, 1, 1, 2], [0], [0]>} : vector<2x8x8xf32>, vector<2x8x16xf32>, vector<2x8x16xf32> -> vector<2x8x16xf32>
    "tpu.trace_stop"() : () -> ()
    %c0_17 = arith.constant 0 : index
    %c0_18 = arith.constant 0 : index
    %c16 = arith.constant 16 : index
    %41 = vector.load %arg2[%c0_17, %c0_18, %c16] : memref<2x8x64xf32, #tpu.memory_space<vmem>>, vector<2x8x16xf32>
    tpu.vector_store %arg2[%c0_17, %c0_18, %c16], %40 {strides = array<i32>} : memref<2x8x64xf32, #tpu.memory_space<vmem>>, vector<2x8x16xf32>,
    %42 = vector.extract_strided_slice %4 {offsets = [0, 0, 32], sizes = [2, 8, 16], strides = [1, 1, 1]} : vector<2x8x192xf32> to vector<2x8x16xf32>
    %43 = vector.extract_strided_slice %4 {offsets = [0, 0, 96], sizes = [2, 8, 16], strides = [1, 1, 1]} : vector<2x8x192xf32> to vector<2x8x16xf32>
    %44 = vector.extract_strided_slice %4 {offsets = [0, 0, 160], sizes = [2, 8, 16], strides = [1, 1, 1]} : vector<2x8x192xf32> to vector<2x8x16xf32>
    "tpu.trace_start"() <{level = 10 : i32, message = "btd,bsd->bts"}> : () -> ()
    %cst_19 = arith.constant dense<0.000000e+00> : vector<2x8x8xf32>
    %45 = tpu.matmul %42, %43, %cst_19 {dimension_numbers = #tpu.dot_dimension_numbers<[2], [2], [1], [1], [0, 0, 0, 1, 1, 1], [0], [0]>} : vector<2x8x16xf32>, vector<2x8x16xf32>, vector<2x8x8xf32> -> vector<2x8x8xf32>
    "tpu.trace_stop"() : () -> ()
    %46 = vector.broadcast %5 : f32 to vector<2x8x8xf32>
    %47 = arith.mulf %45, %46 : vector<2x8x8xf32>
    %cst_20 = arith.constant dense<0xFF800000> : vector<8x8xf32>
    %48 = vector.multi_reduction <maximumf>, %47, %cst_20 [0] : vector<2x8x8xf32> to vector<8x8xf32>
    %49 = vector.shape_cast %48 : vector<8x8xf32> to vector<1x8x8xf32>
    %50 = vector.broadcast %49 : vector<1x8x8xf32> to vector<2x8x8xf32>
    %51 = arith.subf %47, %50 : vector<2x8x8xf32>
    %52 = math.exp %51 : vector<2x8x8xf32>
    %cst_21 = arith.constant dense<0.000000e+00> : vector<8x8xf32>
    %53 = vector.multi_reduction <add>, %52, %cst_21 [0] : vector<2x8x8xf32> to vector<8x8xf32>
    %54 = vector.shape_cast %53 : vector<8x8xf32> to vector<1x8x8xf32>
    %55 = tpu.reciprocal %54 : vector<1x8x8xf32> -> vector<1x8x8xf32>
    %56 = vector.broadcast %55 : vector<1x8x8xf32> to vector<2x8x8xf32>
    %57 = arith.mulf %52, %56 : vector<2x8x8xf32>
    "tpu.trace_start"() <{level = 10 : i32, message = "bts,bsd->btd"}> : () -> ()
    %cst_22 = arith.constant dense<0.000000e+00> : vector<2x8x16xf32>
    %58 = tpu.matmul %57, %44, %cst_22 {dimension_numbers = #tpu.dot_dimension_numbers<[2], [1], [1], [2], [0, 0, 0, 1, 1, 2], [0], [0]>} : vector<2x8x8xf32>, vector<2x8x16xf32>, vector<2x8x16xf32> -> vector<2x8x16xf32>
    "tpu.trace_stop"() : () -> ()
    %c0_23 = arith.constant 0 : index
    %c0_24 = arith.constant 0 : index
    %c32 = arith.constant 32 : index
    %59 = vector.load %arg2[%c0_23, %c0_24, %c32] : memref<2x8x64xf32, #tpu.memory_space<vmem>>, vector<2x8x16xf32>
    tpu.vector_store %arg2[%c0_23, %c0_24, %c32], %58 {strides = array<i32>} : memref<2x8x64xf32, #tpu.memory_space<vmem>>, vector<2x8x16xf32>,
    %60 = vector.extract_strided_slice %4 {offsets = [0, 0, 48], sizes = [2, 8, 16], strides = [1, 1, 1]} : vector<2x8x192xf32> to vector<2x8x16xf32>
    %61 = vector.extract_strided_slice %4 {offsets = [0, 0, 112], sizes = [2, 8, 16], strides = [1, 1, 1]} : vector<2x8x192xf32> to vector<2x8x16xf32>
    %62 = vector.extract_strided_slice %4 {offsets = [0, 0, 176], sizes = [2, 8, 16], strides = [1, 1, 1]} : vector<2x8x192xf32> to vector<2x8x16xf32>
    "tpu.trace_start"() <{level = 10 : i32, message = "btd,bsd->bts"}> : () -> ()
    %cst_25 = arith.constant dense<0.000000e+00> : vector<2x8x8xf32>
    %63 = tpu.matmul %60, %61, %cst_25 {dimension_numbers = #tpu.dot_dimension_numbers<[2], [2], [1], [1], [0, 0, 0, 1, 1, 1], [0], [0]>} : vector<2x8x16xf32>, vector<2x8x16xf32>, vector<2x8x8xf32> -> vector<2x8x8xf32>
    "tpu.trace_stop"() : () -> ()
    %64 = vector.broadcast %5 : f32 to vector<2x8x8xf32>
    %65 = arith.mulf %63, %64 : vector<2x8x8xf32>
    %cst_26 = arith.constant dense<0xFF800000> : vector<8x8xf32>
    %66 = vector.multi_reduction <maximumf>, %65, %cst_26 [0] : vector<2x8x8xf32> to vector<8x8xf32>
    %67 = vector.shape_cast %66 : vector<8x8xf32> to vector<1x8x8xf32>
    %68 = vector.broadcast %67 : vector<1x8x8xf32> to vector<2x8x8xf32>
    %69 = arith.subf %65, %68 : vector<2x8x8xf32>
    %70 = math.exp %69 : vector<2x8x8xf32>
    %cst_27 = arith.constant dense<0.000000e+00> : vector<8x8xf32>
    %71 = vector.multi_reduction <add>, %70, %cst_27 [0] : vector<2x8x8xf32> to vector<8x8xf32>
    %72 = vector.shape_cast %71 : vector<8x8xf32> to vector<1x8x8xf32>
    %73 = tpu.reciprocal %72 : vector<1x8x8xf32> -> vector<1x8x8xf32>
    %74 = vector.broadcast %73 : vector<1x8x8xf32> to vector<2x8x8xf32>
    %75 = arith.mulf %70, %74 : vector<2x8x8xf32>
    "tpu.trace_start"() <{level = 10 : i32, message = "bts,bsd->btd"}> : () -> ()
    %cst_28 = arith.constant dense<0.000000e+00> : vector<2x8x16xf32>
    %76 = tpu.matmul %75, %62, %cst_28 {dimension_numbers = #tpu.dot_dimension_numbers<[2], [1], [1], [2], [0, 0, 0, 1, 1, 2], [0], [0]>} : vector<2x8x8xf32>, vector<2x8x16xf32>, vector<2x8x16xf32> -> vector<2x8x16xf32>
    "tpu.trace_stop"() : () -> ()
    %c0_29 = arith.constant 0 : index
    %c0_30 = arith.constant 0 : index
    %c48 = arith.constant 48 : index
    %77 = vector.load %arg2[%c0_29, %c0_30, %c48] : memref<2x8x64xf32, #tpu.memory_space<vmem>>, vector<2x8x16xf32>
    tpu.vector_store %arg2[%c0_29, %c0_30, %c48], %76 {strides = array<i32>} : memref<2x8x64xf32, #tpu.memory_space<vmem>>, vector<2x8x16xf32>,
    return
  }
}

</mosaic_0001>

<llo_original>
// kernel: tpu_custom_call.1
$region0: #{tpu_custom_call.1}
  #allocation0 [shape = 'u32[]', space=smem, size = 0x4, offset = 0x4, fixed_abs, tag = 'smem constant byte address 0x4 - core index']
  #allocation1 [shape = 'u32[144,128]{1,0:T(1,128)}', space=vmem, size = 0x12000, scoped, tag = 'internal scratch']
  %s0 = inlined_call_operand.vmem [shape: f32[2,8,1024], index: 0, kind: input, shape index: {}]
  %s1 = inlined_call_operand.vmem [shape: f32[1024,192], index: 1, kind: input, shape index: {}]
  %s2 = inlined_call_operand.hbm [shape: f32[2,8,64], index: 2, kind: output, shape index: {}]
  %s3 = sld [smem:[#allocation0]]
  $region18: #{tpu_custom_call.1} parent=0
    _
  %s5 = ssub.s32 1, %s3
  %s6 = scalar_select 0, %s5, %s3
  $region1: #{tpu_custom_call.1} parent=0
    #allocation2 [shape = 'u8[8192]{0}', space=vmem, size = 0x2000, scoped, tag = 'output window, operand 0, single buffered']
    #allocation3 [shape = 's32[1]{0}', space=sflag, size = 0x4, scoped, tag = 'scoped memory for tpu_custom_call.1']
    %7 = vsyncpa [#allocation3], 0
    // Predicated region
    $region2: #{tpu_custom_call.1} parent=1 // pred_check
      _
    $region3: #{tpu_custom_call.1} parent=1 // pred_check_branch
      %9 = sbr.rel (0) target = $region5
    $region4: #{tpu_custom_call.1} parent=1 // pred_region
      _
    $region5: #{tpu_custom_call.1} parent=1 // pred_fallthru
      _
    // Predicated region
    $region6: #{tpu_custom_call.1} parent=1 // pred_check
      _
    $region7: #{tpu_custom_call.1} parent=1 // pred_check_branch
      %11 = sbr.rel (0) target = $region9
    $region8: #{tpu_custom_call.1} parent=1 // pred_region
      _
    $region9: #{tpu_custom_call.1} parent=1 // pred_fallthru
      _
    %v12 = vld [vmem:[%s0] sm:$0xff]
    %v13 = vld [vmem:[%s0 + $0x8] sm:$0xff]
    %v14 = vld [vmem:[%s0 + $0x10] sm:$0xff]
    %v15 = vld [vmem:[%s0 + $0x18] sm:$0xff]
    %v16 = vld [vmem:[%s0 + $0x20] sm:$0xff]
    %v17 = vld [vmem:[%s0 + $0x28] sm:$0xff]
    %v18 = vld [vmem:[%s0 + $0x30] sm:$0xff]
    %v19 = vld [vmem:[%s0 + $0x38] sm:$0xff]
    %v20 = vld [vmem:[%s0 + $0x40] sm:$0xff]
    %v21 = vld [vmem:[%s0 + $0x48] sm:$0xff]
    %v22 = vld [vmem:[%s0 + $0x50] sm:$0xff]
    %v23 = vld [vmem:[%s0 + $0x58] sm:$0xff]
    %v24 = vld [vmem:[%s0 + $0x60] sm:$0xff]
    %v25 = vld [vmem:[%s0 + $0x68] sm:$0xff]
    %v26 = vld [vmem:[%s0 + $0x70] sm:$0xff]
    %v27 = vld [vmem:[%s0 + $0x78] sm:$0xff]
    %v28 = vld [vmem:[%s1] sm:$0xff]
    %v29 = vld [vmem:[%s1 + $0x8] sm:$0xff]
    %v30 = vld [vmem:[%s1 + $0x10] sm:$0xff]
    %v31 = vld [vmem:[%s1 + $0x18] sm:$0xff]
    %v32 = vld [vmem:[%s1 + $0x20] sm:$0xff]
    %v33 = vld [vmem:[%s1 + $0x28] sm:$0xff]
    %v34 = vld [vmem:[%s1 + $0x30] sm:$0xff]
    %v35 = vld [vmem:[%s1 + $0x38] sm:$0xff]
    %v36 = vld [vmem:[%s1 + $0x40] sm:$0xff]
    %v37 = vld [vmem:[%s1 + $0x48] sm:$0xff]
    %v38 = vld [vmem:[%s1 + $0x50] sm:$0xff]
    %v39 = vld [vmem:[%s1 + $0x58] sm:$0xff]
    %v40 = vld [vmem:[%s1 + $0x60] sm:$0xff]
    %v41 = vld [vmem:[%s1 + $0x68] sm:$0xff]
    %v42 = vld [vmem:[%s1 + $0x70] sm:$0xff]
    %v43 = vld [vmem:[%s1 + $0x78] sm:$0xff]
    %v44 = vld [vmem:[%s1 + $0x80] sm:$0xff]
    %v45 = vld [vmem:[%s1 + $0x88] sm:$0xff]
    %v46 = vld [vmem:[%s1 + $0x90] sm:$0xff]
    %v47 = vld [vmem:[%s1 + $0x98] sm:$0xff]
    %v48 = vld [vmem:[%s1 + $0xa0] sm:$0xff]
    %v49 = vld [vmem:[%s1 + $0xa8] sm:$0xff]
    %v50 = vld [vmem:[%s1 + $0xb0] sm:$0xff]
    %v51 = vld [vmem:[%s1 + $0xb8] sm:$0xff]
    %v52 = vld [vmem:[%s1 + $0xc0] sm:$0xff]
    %v53 = vld [vmem:[%s1 + $0xc8] sm:$0xff]
    %v54 = vld [vmem:[%s1 + $0xd0] sm:$0xff]
    %v55 = vld [vmem:[%s1 + $0xd8] sm:$0xff]
    %v56 = vld [vmem:[%s1 + $0xe0] sm:$0xff]
    %v57 = vld [vmem:[%s1 + $0xe8] sm:$0xff]
    %v58 = vld [vmem:[%s1 + $0xf0] sm:$0xff]
    %v59 = vld [vmem:[%s1 + $0xf8] sm:$0xff]
    %v60 = vld [vmem:[%s1 + $0x100] sm:$0xff]
    %v61 = vld [vmem:[%s1 + $0x108] sm:$0xff]
    %v62 = vld [vmem:[%s1 + $0x110] sm:$0xff]
    %v63 = vld [vmem:[%s1 + $0x118] sm:$0xff]
    %v64 = vld [vmem:[%s1 + $0x120] sm:$0xff]
    %v65 = vld [vmem:[%s1 + $0x128] sm:$0xff]
    %v66 = vld [vmem:[%s1 + $0x130] sm:$0xff]
    %v67 = vld [vmem:[%s1 + $0x138] sm:$0xff]
    %v68 = vld [vmem:[%s1 + $0x140] sm:$0xff]
    %v69 = vld [vmem:[%s1 + $0x148] sm:$0xff]
    %v70 = vld [vmem:[%s1 + $0x150] sm:$0xff]
    %v71 = vld [vmem:[%s1 + $0x158] sm:$0xff]
    %v72 = vld [vmem:[%s1 + $0x160] sm:$0xff]
    %v73 = vld [vmem:[%s1 + $0x168] sm:$0xff]
    %v74 = vld [vmem:[%s1 + $0x170] sm:$0xff]
    %v75 = vld [vmem:[%s1 + $0x178] sm:$0xff]
    %v76 = vld [vmem:[%s1 + $0x180] sm:$0xff]
    %v77 = vld [vmem:[%s1 + $0x188] sm:$0xff]
    %v78 = vld [vmem:[%s1 + $0x190] sm:$0xff]
    %v79 = vld [vmem:[%s1 + $0x198] sm:$0xff]
    %v80 = vld [vmem:[%s1 + $0x1a0] sm:$0xff]
    %v81 = vld [vmem:[%s1 + $0x1a8] sm:$0xff]
    %v82 = vld [vmem:[%s1 + $0x1b0] sm:$0xff]
    %v83 = vld [vmem:[%s1 + $0x1b8] sm:$0xff]
    %v84 = vld [vmem:[%s1 + $0x1c0] sm:$0xff]
    %v85 = vld [vmem:[%s1 + $0x1c8] sm:$0xff]
    %v86 = vld [vmem:[%s1 + $0x1d0] sm:$0xff]
    %v87 = vld [vmem:[%s1 + $0x1d8] sm:$0xff]
    %v88 = vld [vmem:[%s1 + $0x1e0] sm:$0xff]
    %v89 = vld [vmem:[%s1 + $0x1e8] sm:$0xff]
    %v90 = vld [vmem:[%s1 + $0x1f0] sm:$0xff]
    %v91 = vld [vmem:[%s1 + $0x1f8] sm:$0xff]
    %v92 = vld [vmem:[%s1 + $0x200] sm:$0xff]
    %v93 = vld [vmem:[%s1 + $0x208] sm:$0xff]
    %v94 = vld [vmem:[%s1 + $0x210] sm:$0xff]
    %v95 = vld [vmem:[%s1 + $0x218] sm:$0xff]
    %v96 = vld [vmem:[%s1 + $0x220] sm:$0xff]
    %v97 = vld [vmem:[%s1 + $0x228] sm:$0xff]
    %v98 = vld [vmem:[%s1 + $0x230] sm:$0xff]
    %v99 = vld [vmem:[%s1 + $0x238] sm:$0xff]
    %v100 = vld [vmem:[%s1 + $0x240] sm:$0xff]
    %v101 = vld [vmem:[%s1 + $0x248] sm:$0xff]
    %v102 = vld [vmem:[%s1 + $0x250] sm:$0xff]
    %v103 = vld [vmem:[%s1 + $0x258] sm:$0xff]
    %v104 = vld [vmem:[%s1 + $0x260] sm:$0xff]
    %v105 = vld [vmem:[%s1 + $0x268] sm:$0xff]
    %v106 = vld [vmem:[%s1 + $0x270] sm:$0xff]
    %v107 = vld [vmem:[%s1 + $0x278] sm:$0xff]
    %v108 = vld [vmem:[%s1 + $0x280] sm:$0xff]
    %v109 = vld [vmem:[%s1 + $0x288] sm:$0xff]
    %v110 = vld [vmem:[%s1 + $0x290] sm:$0xff]
    %v111 = vld [vmem:[%s1 + $0x298] sm:$0xff]
    %v112 = vld [vmem:[%s1 + $0x2a0] sm:$0xff]
    %v113 = vld [vmem:[%s1 + $0x2a8] sm:$0xff]
    %v114 = vld [vmem:[%s1 + $0x2b0] sm:$0xff]
    %v115 = vld [vmem:[%s1 + $0x2b8] sm:$0xff]
    %v116 = vld [vmem:[%s1 + $0x2c0] sm:$0xff]
    %v117 = vld [vmem:[%s1 + $0x2c8] sm:$0xff]
    %v118 = vld [vmem:[%s1 + $0x2d0] sm:$0xff]
    %v119 = vld [vmem:[%s1 + $0x2d8] sm:$0xff]
    %v120 = vld [vmem:[%s1 + $0x2e0] sm:$0xff]
    %v121 = vld [vmem:[%s1 + $0x2e8] sm:$0xff]
    %v122 = vld [vmem:[%s1 + $0x2f0] sm:$0xff]
    %v123 = vld [vmem:[%s1 + $0x2f8] sm:$0xff]
    %v124 = vld [vmem:[%s1 + $0x300] sm:$0xff]
    %v125 = vld [vmem:[%s1 + $0x308] sm:$0xff]
    %v126 = vld [vmem:[%s1 + $0x310] sm:$0xff]
    %v127 = vld [vmem:[%s1 + $0x318] sm:$0xff]
    %v128 = vld [vmem:[%s1 + $0x320] sm:$0xff]
    %v129 = vld [vmem:[%s1 + $0x328] sm:$0xff]
    %v130 = vld [vmem:[%s1 + $0x330] sm:$0xff]
    %v131 = vld [vmem:[%s1 + $0x338] sm:$0xff]
    %v132 = vld [vmem:[%s1 + $0x340] sm:$0xff]
    %v133 = vld [vmem:[%s1 + $0x348] sm:$0xff]
    %v134 = vld [vmem:[%s1 + $0x350] sm:$0xff]
    %v135 = vld [vmem:[%s1 + $0x358] sm:$0xff]
    %v136 = vld [vmem:[%s1 + $0x360] sm:$0xff]
    %v137 = vld [vmem:[%s1 + $0x368] sm:$0xff]
    %v138 = vld [vmem:[%s1 + $0x370] sm:$0xff]
    %v139 = vld [vmem:[%s1 + $0x378] sm:$0xff]
    %v140 = vld [vmem:[%s1 + $0x380] sm:$0xff]
    %v141 = vld [vmem:[%s1 + $0x388] sm:$0xff]
    %v142 = vld [vmem:[%s1 + $0x390] sm:$0xff]
    %v143 = vld [vmem:[%s1 + $0x398] sm:$0xff]
    %v144 = vld [vmem:[%s1 + $0x3a0] sm:$0xff]
    %v145 = vld [vmem:[%s1 + $0x3a8] sm:$0xff]
    %v146 = vld [vmem:[%s1 + $0x3b0] sm:$0xff]
    %v147 = vld [vmem:[%s1 + $0x3b8] sm:$0xff]
    %v148 = vld [vmem:[%s1 + $0x3c0] sm:$0xff]
    %v149 = vld [vmem:[%s1 + $0x3c8] sm:$0xff]
    %v150 = vld [vmem:[%s1 + $0x3d0] sm:$0xff]
    %v151 = vld [vmem:[%s1 + $0x3d8] sm:$0xff]
    %v152 = vld [vmem:[%s1 + $0x3e0] sm:$0xff]
    %v153 = vld [vmem:[%s1 + $0x3e8] sm:$0xff]
    %v154 = vld [vmem:[%s1 + $0x3f0] sm:$0xff]
    %v155 = vld [vmem:[%s1 + $0x3f8] sm:$0xff]
    %v156 = vld [vmem:[%s1 + $0x400] sm:$0xff]
    %v157 = vld [vmem:[%s1 + $0x408] sm:$0xff]
    %v158 = vld [vmem:[%s1 + $0x410] sm:$0xff]
    %v159 = vld [vmem:[%s1 + $0x418] sm:$0xff]
    %v160 = vld [vmem:[%s1 + $0x420] sm:$0xff]
    %v161 = vld [vmem:[%s1 + $0x428] sm:$0xff]
    %v162 = vld [vmem:[%s1 + $0x430] sm:$0xff]
    %v163 = vld [vmem:[%s1 + $0x438] sm:$0xff]
    %v164 = vld [vmem:[%s1 + $0x440] sm:$0xff]
    %v165 = vld [vmem:[%s1 + $0x448] sm:$0xff]
    %v166 = vld [vmem:[%s1 + $0x450] sm:$0xff]
    %v167 = vld [vmem:[%s1 + $0x458] sm:$0xff]
    %v168 = vld [vmem:[%s1 + $0x460] sm:$0xff]
    %v169 = vld [vmem:[%s1 + $0x468] sm:$0xff]
    %v170 = vld [vmem:[%s1 + $0x470] sm:$0xff]
    %v171 = vld [vmem:[%s1 + $0x478] sm:$0xff]
    %v172 = vld [vmem:[%s1 + $0x480] sm:$0xff]
    %v173 = vld [vmem:[%s1 + $0x488] sm:$0xff]
    %v174 = vld [vmem:[%s1 + $0x490] sm:$0xff]
    %v175 = vld [vmem:[%s1 + $0x498] sm:$0xff]
    %v176 = vld [vmem:[%s1 + $0x4a0] sm:$0xff]
    %v177 = vld [vmem:[%s1 + $0x4a8] sm:$0xff]
    %v178 = vld [vmem:[%s1 + $0x4b0] sm:$0xff]
    %v179 = vld [vmem:[%s1 + $0x4b8] sm:$0xff]
    %v180 = vld [vmem:[%s1 + $0x4c0] sm:$0xff]
    %v181 = vld [vmem:[%s1 + $0x4c8] sm:$0xff]
    %v182 = vld [vmem:[%s1 + $0x4d0] sm:$0xff]
    %v183 = vld [vmem:[%s1 + $0x4d8] sm:$0xff]
    %v184 = vld [vmem:[%s1 + $0x4e0] sm:$0xff]
    %v185 = vld [vmem:[%s1 + $0x4e8] sm:$0xff]
    %v186 = vld [vmem:[%s1 + $0x4f0] sm:$0xff]
    %v187 = vld [vmem:[%s1 + $0x4f8] sm:$0xff]
    %v188 = vld [vmem:[%s1 + $0x500] sm:$0xff]
    %v189 = vld [vmem:[%s1 + $0x508] sm:$0xff]
    %v190 = vld [vmem:[%s1 + $0x510] sm:$0xff]
    %v191 = vld [vmem:[%s1 + $0x518] sm:$0xff]
    %v192 = vld [vmem:[%s1 + $0x520] sm:$0xff]
    %v193 = vld [vmem:[%s1 + $0x528] sm:$0xff]
    %v194 = vld [vmem:[%s1 + $0x530] sm:$0xff]
    %v195 = vld [vmem:[%s1 + $0x538] sm:$0xff]
    %v196 = vld [vmem:[%s1 + $0x540] sm:$0xff]
    %v197 = vld [vmem:[%s1 + $0x548] sm:$0xff]
    %v198 = vld [vmem:[%s1 + $0x550] sm:$0xff]
    %v199 = vld [vmem:[%s1 + $0x558] sm:$0xff]
    %v200 = vld [vmem:[%s1 + $0x560] sm:$0xff]
    %v201 = vld [vmem:[%s1 + $0x568] sm:$0xff]
    %v202 = vld [vmem:[%s1 + $0x570] sm:$0xff]
    %v203 = vld [vmem:[%s1 + $0x578] sm:$0xff]
    %v204 = vld [vmem:[%s1 + $0x580] sm:$0xff]
    %v205 = vld [vmem:[%s1 + $0x588] sm:$0xff]
    %v206 = vld [vmem:[%s1 + $0x590] sm:$0xff]
    %v207 = vld [vmem:[%s1 + $0x598] sm:$0xff]
    %v208 = vld [vmem:[%s1 + $0x5a0] sm:$0xff]
    %v209 = vld [vmem:[%s1 + $0x5a8] sm:$0xff]
    %v210 = vld [vmem:[%s1 + $0x5b0] sm:$0xff]
    %v211 = vld [vmem:[%s1 + $0x5b8] sm:$0xff]
    %v212 = vld [vmem:[%s1 + $0x5c0] sm:$0xff]
    %v213 = vld [vmem:[%s1 + $0x5c8] sm:$0xff]
    %v214 = vld [vmem:[%s1 + $0x5d0] sm:$0xff]
    %v215 = vld [vmem:[%s1 + $0x5d8] sm:$0xff]
    %v216 = vld [vmem:[%s1 + $0x5e0] sm:$0xff]
    %v217 = vld [vmem:[%s1 + $0x5e8] sm:$0xff]
    %v218 = vld [vmem:[%s1 + $0x5f0] sm:$0xff]
    %v219 = vld [vmem:[%s1 + $0x5f8] sm:$0xff]
    %v220 = vld [vmem:[%s1 + $0x600] sm:$0xff]
    %v221 = vld [vmem:[%s1 + $0x608] sm:$0xff]
    %v222 = vld [vmem:[%s1 + $0x610] sm:$0xff]
    %v223 = vld [vmem:[%s1 + $0x618] sm:$0xff]
    %v224 = vld [vmem:[%s1 + $0x620] sm:$0xff]
    %v225 = vld [vmem:[%s1 + $0x628] sm:$0xff]
    %v226 = vld [vmem:[%s1 + $0x630] sm:$0xff]
    %v227 = vld [vmem:[%s1 + $0x638] sm:$0xff]
    %v228 = vld [vmem:[%s1 + $0x640] sm:$0xff]
    %v229 = vld [vmem:[%s1 + $0x648] sm:$0xff]
    %v230 = vld [vmem:[%s1 + $0x650] sm:$0xff]
    %v231 = vld [vmem:[%s1 + $0x658] sm:$0xff]
    %v232 = vld [vmem:[%s1 + $0x660] sm:$0xff]
    %v233 = vld [vmem:[%s1 + $0x668] sm:$0xff]
    %v234 = vld [vmem:[%s1 + $0x670] sm:$0xff]
    %v235 = vld [vmem:[%s1 + $0x678] sm:$0xff]
    %v236 = vld [vmem:[%s1 + $0x680] sm:$0xff]
    %v237 = vld [vmem:[%s1 + $0x688] sm:$0xff]
    %v238 = vld [vmem:[%s1 + $0x690] sm:$0xff]
    %v239 = vld [vmem:[%s1 + $0x698] sm:$0xff]
    %v240 = vld [vmem:[%s1 + $0x6a0] sm:$0xff]
    %v241 = vld [vmem:[%s1 + $0x6a8] sm:$0xff]
    %v242 = vld [vmem:[%s1 + $0x6b0] sm:$0xff]
    %v243 = vld [vmem:[%s1 + $0x6b8] sm:$0xff]
    %v244 = vld [vmem:[%s1 + $0x6c0] sm:$0xff]
    %v245 = vld [vmem:[%s1 + $0x6c8] sm:$0xff]
    %v246 = vld [vmem:[%s1 + $0x6d0] sm:$0xff]
    %v247 = vld [vmem:[%s1 + $0x6d8] sm:$0xff]
    %v248 = vld [vmem:[%s1 + $0x6e0] sm:$0xff]
    %v249 = vld [vmem:[%s1 + $0x6e8] sm:$0xff]
    %v250 = vld [vmem:[%s1 + $0x6f0] sm:$0xff]
    %v251 = vld [vmem:[%s1 + $0x6f8] sm:$0xff]
    %v252 = vld [vmem:[%s1 + $0x700] sm:$0xff]
    %v253 = vld [vmem:[%s1 + $0x708] sm:$0xff]
    %v254 = vld [vmem:[%s1 + $0x710] sm:$0xff]
    %v255 = vld [vmem:[%s1 + $0x718] sm:$0xff]
    %v256 = vld [vmem:[%s1 + $0x720] sm:$0xff]
    %v257 = vld [vmem:[%s1 + $0x728] sm:$0xff]
    %v258 = vld [vmem:[%s1 + $0x730] sm:$0xff]
    %v259 = vld [vmem:[%s1 + $0x738] sm:$0xff]
    %v260 = vld [vmem:[%s1 + $0x740] sm:$0xff]
    %v261 = vld [vmem:[%s1 + $0x748] sm:$0xff]
    %v262 = vld [vmem:[%s1 + $0x750] sm:$0xff]
    %v263 = vld [vmem:[%s1 + $0x758] sm:$0xff]
    %v264 = vld [vmem:[%s1 + $0x760] sm:$0xff]
    %v265 = vld [vmem:[%s1 + $0x768] sm:$0xff]
    %v266 = vld [vmem:[%s1 + $0x770] sm:$0xff]
    %v267 = vld [vmem:[%s1 + $0x778] sm:$0xff]
    %v268 = vld [vmem:[%s1 + $0x780] sm:$0xff]
    %v269 = vld [vmem:[%s1 + $0x788] sm:$0xff]
    %v270 = vld [vmem:[%s1 + $0x790] sm:$0xff]
    %v271 = vld [vmem:[%s1 + $0x798] sm:$0xff]
    %v272 = vld [vmem:[%s1 + $0x7a0] sm:$0xff]
    %v273 = vld [vmem:[%s1 + $0x7a8] sm:$0xff]
    %v274 = vld [vmem:[%s1 + $0x7b0] sm:$0xff]
    %v275 = vld [vmem:[%s1 + $0x7b8] sm:$0xff]
    %v276 = vld [vmem:[%s1 + $0x7c0] sm:$0xff]
    %v277 = vld [vmem:[%s1 + $0x7c8] sm:$0xff]
    %v278 = vld [vmem:[%s1 + $0x7d0] sm:$0xff]
    %v279 = vld [vmem:[%s1 + $0x7d8] sm:$0xff]
    %v280 = vld [vmem:[%s1 + $0x7e0] sm:$0xff]
    %v281 = vld [vmem:[%s1 + $0x7e8] sm:$0xff]
    %v282 = vld [vmem:[%s1 + $0x7f0] sm:$0xff]
    %v283 = vld [vmem:[%s1 + $0x7f8] sm:$0xff]
    %284 = vmatprep.subr.mxu0 %v59
    %285 = vmatpush1.msra.mxu0 %v58
    %286 = vmatprep.subr.mxu0 %v57
    %287 = vmatpush1.msra.mxu0 %v56
    %288 = vmatprep.subr.mxu0 %v55
    %289 = vmatpush1.msra.mxu0 %v54
    %290 = vmatprep.subr.mxu0 %v53
    %291 = vmatpush1.msra.mxu0 %v52
    %292 = vmatprep.subr.mxu0 %v51
    %293 = vmatpush1.msra.mxu0 %v50
    %294 = vmatprep.subr.mxu0 %v49
    %295 = vmatpush1.msra.mxu0 %v48
    %296 = vmatprep.subr.mxu0 %v47
    %297 = vmatpush1.msra.mxu0 %v46
    %298 = vmatprep.subr.mxu0 %v45
    %299 = vmatpush1.msra.mxu0 %v44
    %300 = vmatprep.subr.mxu0 %v43
    %301 = vmatpush1.msra.mxu0 %v42
    %302 = vmatprep.subr.mxu0 %v41
    %303 = vmatpush1.msra.mxu0 %v40
    %304 = vmatprep.subr.mxu0 %v39
    %305 = vmatpush1.msra.mxu0 %v38
    %306 = vmatprep.subr.mxu0 %v37
    %307 = vmatpush1.msra.mxu0 %v36
    %308 = vmatprep.subr.mxu0 %v35
    %309 = vmatpush1.msra.mxu0 %v34
    %310 = vmatprep.subr.mxu0 %v33
    %311 = vmatpush1.msra.mxu0 %v32
    %312 = vmatprep.subr.mxu0 %v31
    %313 = vmatpush1.msra.mxu0 %v30
    %314 = vmatprep.subr.mxu0 %v29
    %315 = vmatpush1.msra.mxu0 %v28
    %316 = vmatprep.subr.mxu0 %v91
    %317 = vmatpush2.msra.mxu0 %v90
    %318 = vmatprep.subr.mxu0 %v89
    %319 = vmatpush2.msra.mxu0 %v88
    %320 = vmatprep.subr.mxu0 %v87
    %321 = vmatpush2.msra.mxu0 %v86
    %322 = vmatprep.subr.mxu0 %v85
    %323 = vmatpush2.msra.mxu0 %v84
    %324 = vmatprep.subr.mxu0 %v83
    %325 = vmatpush2.msra.mxu0 %v82
    %326 = vmatprep.subr.mxu0 %v81
    %327 = vmatpush2.msra.mxu0 %v80
    %328 = vmatprep.subr.mxu0 %v79
    %329 = vmatpush2.msra.mxu0 %v78
    %330 = vmatprep.subr.mxu0 %v77
    %331 = vmatpush2.msra.mxu0 %v76
    %332 = vmatprep.subr.mxu0 %v75
    %333 = vmatpush2.msra.mxu0 %v74
    %334 = vmatprep.subr.mxu0 %v73
    %335 = vmatpush2.msra.mxu0 %v72
    %336 = vmatprep.subr.mxu0 %v71
    %337 = vmatpush2.msra.mxu0 %v70
    %338 = vmatprep.subr.mxu0 %v69
    %339 = vmatpush2.msra.mxu0 %v68
    %340 = vmatprep.subr.mxu0 %v67
    %341 = vmatpush2.msra.mxu0 %v66
    %342 = vmatprep.subr.mxu0 %v65
    %343 = vmatpush2.msra.mxu0 %v64
    %344 = vmatprep.subr.mxu0 %v63
    %345 = vmatpush2.msra.mxu0 %v62
    %346 = vmatprep.subr.mxu0 %v61
    %347 = vmatpush2.msra.mxu0 %v60
    %348 = vmatprep.mubr.f32.mxu0 %v13
    %349 = vmatmul.mubr.f32.gmra.mxu0 %v12
    %v350 = vpop.f32.mrf.mxu0
    %v351 = vadd.f32 0.0, %v350
    %v352 = vpop.f32.mrf.mxu0
    %v353 = vadd.f32 0.0, %v352
    %354 = vmatprep.mubr.f32.mxu0 %v21
    %355 = vmatmul.mubr.f32.gmra.mxu0 %v20
    %v356 = vpop.f32.mrf.mxu0
    %v357 = vadd.f32 0.0, %v356
    %v358 = vpop.f32.mrf.mxu0
    %v359 = vadd.f32 0.0, %v358
    %360 = vdwg.mxu0
    %361 = vmatprep.subr.mxu0 %v123
    %362 = vmatpush1.msra.mxu0 %v122
    %363 = vmatprep.subr.mxu0 %v121
    %364 = vmatpush1.msra.mxu0 %v120
    %365 = vmatprep.subr.mxu0 %v119
    %366 = vmatpush1.msra.mxu0 %v118
    %367 = vmatprep.subr.mxu0 %v117
    %368 = vmatpush1.msra.mxu0 %v116
    %369 = vmatprep.subr.mxu0 %v115
    %370 = vmatpush1.msra.mxu0 %v114
    %371 = vmatprep.subr.mxu0 %v113
    %372 = vmatpush1.msra.mxu0 %v112
    %373 = vmatprep.subr.mxu0 %v111
    %374 = vmatpush1.msra.mxu0 %v110
    %375 = vmatprep.subr.mxu0 %v109
    %376 = vmatpush1.msra.mxu0 %v108
    %377 = vmatprep.subr.mxu0 %v107
    %378 = vmatpush1.msra.mxu0 %v106
    %379 = vmatprep.subr.mxu0 %v105
    %380 = vmatpush1.msra.mxu0 %v104
    %381 = vmatprep.subr.mxu0 %v103
    %382 = vmatpush1.msra.mxu0 %v102
    %383 = vmatprep.subr.mxu0 %v101
    %384 = vmatpush1.msra.mxu0 %v100
    %385 = vmatprep.subr.mxu0 %v99
    %386 = vmatpush1.msra.mxu0 %v98
    %387 = vmatprep.subr.mxu0 %v97
    %388 = vmatpush1.msra.mxu0 %v96
    %389 = vmatprep.subr.mxu0 %v95
    %390 = vmatpush1.msra.mxu0 %v94
    %391 = vmatprep.subr.mxu0 %v93
    %392 = vmatpush1.msra.mxu0 %v92
    %393 = vmatprep.subr.mxu0 %v155
    %394 = vmatpush2.msra.mxu0 %v154
    %395 = vmatprep.subr.mxu0 %v153
    %396 = vmatpush2.msra.mxu0 %v152
    %397 = vmatprep.subr.mxu0 %v151
    %398 = vmatpush2.msra.mxu0 %v150
    %399 = vmatprep.subr.mxu0 %v149
    %400 = vmatpush2.msra.mxu0 %v148
    %401 = vmatprep.subr.mxu0 %v147
    %402 = vmatpush2.msra.mxu0 %v146
    %403 = vmatprep.subr.mxu0 %v145
    %404 = vmatpush2.msra.mxu0 %v144
    %405 = vmatprep.subr.mxu0 %v143
    %406 = vmatpush2.msra.mxu0 %v142
    %407 = vmatprep.subr.mxu0 %v141
    %408 = vmatpush2.msra.mxu0 %v140
    %409 = vmatprep.subr.mxu0 %v139
    %410 = vmatpush2.msra.mxu0 %v138
    %411 = vmatprep.subr.mxu0 %v137
    %412 = vmatpush2.msra.mxu0 %v136
    %413 = vmatprep.subr.mxu0 %v135
    %414 = vmatpush2.msra.mxu0 %v134
    %415 = vmatprep.subr.mxu0 %v133
    %416 = vmatpush2.msra.mxu0 %v132
    %417 = vmatprep.subr.mxu0 %v131
    %418 = vmatpush2.msra.mxu0 %v130
    %419 = vmatprep.subr.mxu0 %v129
    %420 = vmatpush2.msra.mxu0 %v128
    %421 = vmatprep.subr.mxu0 %v127
    %422 = vmatpush2.msra.mxu0 %v126
    %423 = vmatprep.subr.mxu0 %v125
    %424 = vmatpush2.msra.mxu0 %v124
    %425 = vmatprep.mubr.f32.mxu0 %v15
    %426 = vmatmul.mubr.f32.gmra.mxu0 %v14
    %v427 = vpop.f32.mrf.mxu0
    %v428 = vadd.f32 %v351, %v427
    %v429 = vpop.f32.mrf.mxu0
    %v430 = vadd.f32 %v353, %v429
    %431 = vmatprep.mubr.f32.mxu0 %v23
    %432 = vmatmul.mubr.f32.gmra.mxu0 %v22
    %v433 = vpop.f32.mrf.mxu0
    %v434 = vadd.f32 %v357, %v433
    %v435 = vpop.f32.mrf.mxu0
    %v436 = vadd.f32 %v359, %v435
    %437 = vdwg.mxu0
    %438 = vmatprep.subr.mxu0 %v187
    %439 = vmatpush1.msra.mxu0 %v186
    %440 = vmatprep.subr.mxu0 %v185
    %441 = vmatpush1.msra.mxu0 %v184
    %442 = vmatprep.subr.mxu0 %v183
    %443 = vmatpush1.msra.mxu0 %v182
    %444 = vmatprep.subr.mxu0 %v181
    %445 = vmatpush1.msra.mxu0 %v180
    %446 = vmatprep.subr.mxu0 %v179
    %447 = vmatpush1.msra.mxu0 %v178
    %448 = vmatprep.subr.mxu0 %v177
    %449 = vmatpush1.msra.mxu0 %v176
    %450 = vmatprep.subr.mxu0 %v175
    %451 = vmatpush1.msra.mxu0 %v174
    %452 = vmatprep.subr.mxu0 %v173
    %453 = vmatpush1.msra.mxu0 %v172
    %454 = vmatprep.subr.mxu0 %v171
    %455 = vmatpush1.msra.mxu0 %v170
    %456 = vmatprep.subr.mxu0 %v169
    %457 = vmatpush1.msra.mxu0 %v168
    %458 = vmatprep.subr.mxu0 %v167
    %459 = vmatpush1.msra.mxu0 %v166
    %460 = vmatprep.subr.mxu0 %v165
    %461 = vmatpush1.msra.mxu0 %v164
    %462 = vmatprep.subr.mxu0 %v163
    %463 = vmatpush1.msra.mxu0 %v162
    %464 = vmatprep.subr.mxu0 %v161
    %465 = vmatpush1.msra.mxu0 %v160
    %466 = vmatprep.subr.mxu0 %v159
    %467 = vmatpush1.msra.mxu0 %v158
    %468 = vmatprep.subr.mxu0 %v157
    %469 = vmatpush1.msra.mxu0 %v156
    %470 = vmatprep.subr.mxu0 %v219
    %471 = vmatpush2.msra.mxu0 %v218
    %472 = vmatprep.subr.mxu0 %v217
    %473 = vmatpush2.msra.mxu0 %v216
    %474 = vmatprep.subr.mxu0 %v215
    %475 = vmatpush2.msra.mxu0 %v214
    %476 = vmatprep.subr.mxu0 %v213
    %477 = vmatpush2.msra.mxu0 %v212
    %478 = vmatprep.subr.mxu0 %v211
    %479 = vmatpush2.msra.mxu0 %v210
    %480 = vmatprep.subr.mxu0 %v209
    %481 = vmatpush2.msra.mxu0 %v208
    %482 = vmatprep.subr.mxu0 %v207
    %483 = vmatpush2.msra.mxu0 %v206
    %484 = vmatprep.subr.mxu0 %v205
    %485 = vmatpush2.msra.mxu0 %v204
    %486 = vmatprep.subr.mxu0 %v203
    %487 = vmatpush2.msra.mxu0 %v202
    %488 = vmatprep.subr.mxu0 %v201
    %489 = vmatpush2.msra.mxu0 %v200
    %490 = vmatprep.subr.mxu0 %v199
    %491 = vmatpush2.msra.mxu0 %v198
    %492 = vmatprep.subr.mxu0 %v197
    %493 = vmatpush2.msra.mxu0 %v196
    %494 = vmatprep.subr.mxu0 %v195
    %495 = vmatpush2.msra.mxu0 %v194
    %496 = vmatprep.subr.mxu0 %v193
    %497 = vmatpush2.msra.mxu0 %v192
    %498 = vmatprep.subr.mxu0 %v191
    %499 = vmatpush2.msra.mxu0 %v190
    %500 = vmatprep.subr.mxu0 %v189
    %501 = vmatpush2.msra.mxu0 %v188
    %502 = vmatprep.mubr.f32.mxu0 %v17
    %503 = vmatmul.mubr.f32.gmra.mxu0 %v16
    %v504 = vpop.f32.mrf.mxu0
    %v505 = vadd.f32 %v428, %v504
    %v506 = vpop.f32.mrf.mxu0
    %v507 = vadd.f32 %v430, %v506
    %508 = vmatprep.mubr.f32.mxu0 %v25
    %509 = vmatmul.mubr.f32.gmra.mxu0 %v24
    %v510 = vpop.f32.mrf.mxu0
    %v511 = vadd.f32 %v434, %v510
    %v512 = vpop.f32.mrf.mxu0
    %v513 = vadd.f32 %v436, %v512
    %514 = vdwg.mxu0
    %515 = vmatprep.subr.mxu0 %v251
    %516 = vmatpush1.msra.mxu0 %v250
    %517 = vmatprep.subr.mxu0 %v249
    %518 = vmatpush1.msra.mxu0 %v248
    %519 = vmatprep.subr.mxu0 %v247
    %520 = vmatpush1.msra.mxu0 %v246
    %521 = vmatprep.subr.mxu0 %v245
    %522 = vmatpush1.msra.mxu0 %v244
    %523 = vmatprep.subr.mxu0 %v243
    %524 = vmatpush1.msra.mxu0 %v242
    %525 = vmatprep.subr.mxu0 %v241
    %526 = vmatpush1.msra.mxu0 %v240
    %527 = vmatprep.subr.mxu0 %v239
    %528 = vmatpush1.msra.mxu0 %v238
    %529 = vmatprep.subr.mxu0 %v237
    %530 = vmatpush1.msra.mxu0 %v236
    %531 = vmatprep.subr.mxu0 %v235
    %532 = vmatpush1.msra.mxu0 %v234
    %533 = vmatprep.subr.mxu0 %v233
    %534 = vmatpush1.msra.mxu0 %v232
    %535 = vmatprep.subr.mxu0 %v231
    %536 = vmatpush1.msra.mxu0 %v230
    %537 = vmatprep.subr.mxu0 %v229
    %538 = vmatpush1.msra.mxu0 %v228
    %539 = vmatprep.subr.mxu0 %v227
    %540 = vmatpush1.msra.mxu0 %v226
    %541 = vmatprep.subr.mxu0 %v225
    %542 = vmatpush1.msra.mxu0 %v224
    %543 = vmatprep.subr.mxu0 %v223
    %544 = vmatpush1.msra.mxu0 %v222
    %545 = vmatprep.subr.mxu0 %v221
    %546 = vmatpush1.msra.mxu0 %v220
    %547 = vmatprep.subr.mxu0 %v283
    %548 = vmatpush2.msra.mxu0 %v282
    %549 = vmatprep.subr.mxu0 %v281
    %550 = vmatpush2.msra.mxu0 %v280
    %551 = vmatprep.subr.mxu0 %v279
    %552 = vmatpush2.msra.mxu0 %v278
    %553 = vmatprep.subr.mxu0 %v277
    %554 = vmatpush2.msra.mxu0 %v276
    %555 = vmatprep.subr.mxu0 %v275
    %556 = vmatpush2.msra.mxu0 %v274
    %557 = vmatprep.subr.mxu0 %v273
    %558 = vmatpush2.msra.mxu0 %v272
    %559 = vmatprep.subr.mxu0 %v271
    %560 = vmatpush2.msra.mxu0 %v270
    %561 = vmatprep.subr.mxu0 %v269
    %562 = vmatpush2.msra.mxu0 %v268
    %563 = vmatprep.subr.mxu0 %v267
    %564 = vmatpush2.msra.mxu0 %v266
    %565 = vmatprep.subr.mxu0 %v265
    %566 = vmatpush2.msra.mxu0 %v264
    %567 = vmatprep.subr.mxu0 %v263
    %568 = vmatpush2.msra.mxu0 %v262
    %569 = vmatprep.subr.mxu0 %v261
    %570 = vmatpush2.msra.mxu0 %v260
    %571 = vmatprep.subr.mxu0 %v259
    %572 = vmatpush2.msra.mxu0 %v258
    %573 = vmatprep.subr.mxu0 %v257
    %574 = vmatpush2.msra.mxu0 %v256
    %575 = vmatprep.subr.mxu0 %v255
    %576 = vmatpush2.msra.mxu0 %v254
    %577 = vmatprep.subr.mxu0 %v253
    %578 = vmatpush2.msra.mxu0 %v252
    %579 = vmatprep.mubr.f32.mxu0 %v19
    %580 = vmatmul.mubr.f32.gmra.mxu0 %v18
    %v581 = vpop.f32.mrf.mxu0
    %v582 = vadd.f32 %v505, %v581
    %v583 = vpop.f32.mrf.mxu0
    %v584 = vadd.f32 %v507, %v583
    %585 = vmatprep.mubr.f32.mxu0 %v27
    %586 = vmatmul.mubr.f32.gmra.mxu0 %v26
    %v587 = vpop.f32.mrf.mxu0
    %v588 = vadd.f32 %v511, %v587
    %v589 = vpop.f32.mrf.mxu0
    %v590 = vadd.f32 %v513, %v589
    %591 = vdwg.mxu0
    %593 = vrot.lane.b32.xlu0 %v582, 64
    %v594 = vpop.permute.xlu0 %593
    %vm595 = vcmask 130048
    %v596 = vsel %vm595, %v582, 0
    %v598 = vsel %vm595, %v594, 0
    %600 = vmatprep.subr.mxu0 0.0
    %601 = vmatpush1.xpose.msra.mxu0 0.0
    %602 = vmatprep.subr.mxu0 0.0
    %603 = vmatpush1.xpose.msra.mxu0 0.0
    %604 = vmatprep.subr.mxu0 0.0
    %605 = vmatpush1.xpose.msra.mxu0 0.0
    %606 = vmatprep.subr.mxu0 0.0
    %607 = vmatpush1.xpose.msra.mxu0 0.0
    %608 = vmatprep.subr.mxu0 0.0
    %609 = vmatpush1.xpose.msra.mxu0 0.0
    %610 = vmatprep.subr.mxu0 0.0
    %611 = vmatpush1.xpose.msra.mxu0 0.0
    %612 = vmatprep.subr.mxu0 0.0
    %613 = vmatpush1.xpose.msra.mxu0 0.0
    %614 = vmatprep.subr.mxu0 0.0
    %615 = vmatpush1.xpose.msra.mxu0 0.0
    %616 = vmatprep.subr.mxu0 0.0
    %617 = vmatpush1.xpose.msra.mxu0 0.0
    %618 = vmatprep.subr.mxu0 0.0
    %619 = vmatpush1.xpose.msra.mxu0 0.0
    %620 = vmatprep.subr.mxu0 0.0
    %621 = vmatpush1.xpose.msra.mxu0 0.0
    %622 = vmatprep.subr.mxu0 0.0
    %623 = vmatpush1.xpose.msra.mxu0 0.0
    %624 = vmatprep.subr.mxu0 0.0
    %625 = vmatpush1.xpose.msra.mxu0 0.0
    %626 = vmatprep.subr.mxu0 0.0
    %627 = vmatpush1.xpose.msra.mxu0 0.0
    %628 = vmatprep.subr.mxu0 0.0
    %629 = vmatpush1.xpose.msra.mxu0 0.0
    %630 = vmatprep.subr.mxu0 0.0
    %631 = vmatpush1.xpose.msra.mxu0 %v598
    %632 = vmatprep.subr.mxu0 0.0
    %633 = vmatpush2.xpose.msra.mxu0 0.0
    %634 = vmatprep.subr.mxu0 0.0
    %635 = vmatpush2.xpose.msra.mxu0 0.0
    %636 = vmatprep.subr.mxu0 0.0
    %637 = vmatpush2.xpose.msra.mxu0 0.0
    %638 = vmatprep.subr.mxu0 0.0
    %639 = vmatpush2.xpose.msra.mxu0 0.0
    %640 = vmatprep.subr.mxu0 0.0
    %641 = vmatpush2.xpose.msra.mxu0 0.0
    %642 = vmatprep.subr.mxu0 0.0
    %643 = vmatpush2.xpose.msra.mxu0 0.0
    %644 = vmatprep.subr.mxu0 0.0
    %645 = vmatpush2.xpose.msra.mxu0 0.0
    %646 = vmatprep.subr.mxu0 0.0
    %647 = vmatpush2.xpose.msra.mxu0 0.0
    %648 = vmatprep.subr.mxu0 0.0
    %649 = vmatpush2.xpose.msra.mxu0 0.0
    %650 = vmatprep.subr.mxu0 0.0
    %651 = vmatpush2.xpose.msra.mxu0 0.0
    %652 = vmatprep.subr.mxu0 0.0
    %653 = vmatpush2.xpose.msra.mxu0 0.0
    %654 = vmatprep.subr.mxu0 0.0
    %655 = vmatpush2.xpose.msra.mxu0 0.0
    %656 = vmatprep.subr.mxu0 0.0
    %657 = vmatpush2.xpose.msra.mxu0 0.0
    %658 = vmatprep.subr.mxu0 0.0
    %659 = vmatpush2.xpose.msra.mxu0 0.0
    %660 = vmatprep.subr.mxu0 0.0
    %661 = vmatpush2.xpose.msra.mxu0 0.0
    %662 = vmatprep.subr.mxu0 0.0
    %663 = vmatpush2.xpose.msra.mxu0 0.0
    %664 = vmatprep.mubr.f32.mxu0 0.0
    %665 = vmatmul.mubr.f32.gmra.mxu0 %v596
    %v666 = vpop.f32.mrf.mxu0
    %v667 = vadd.f32 0.0, %v666
    %v668 = vpop.f32.mrf.mxu0
    %669 = vdwg.mxu0
    %671 = vrot.lane.b32.xlu0 %v588, 64
    %v672 = vpop.permute.xlu0 %671
    %v673 = vsel %vm595, %v588, 0
    %v675 = vsel %vm595, %v672, 0
    %677 = vmatprep.subr.mxu0 0.0
    %678 = vmatpush1.xpose.msra.mxu0 0.0
    %679 = vmatprep.subr.mxu0 0.0
    %680 = vmatpush1.xpose.msra.mxu0 0.0
    %681 = vmatprep.subr.mxu0 0.0
    %682 = vmatpush1.xpose.msra.mxu0 0.0
    %683 = vmatprep.subr.mxu0 0.0
    %684 = vmatpush1.xpose.msra.mxu0 0.0
    %685 = vmatprep.subr.mxu0 0.0
    %686 = vmatpush1.xpose.msra.mxu0 0.0
    %687 = vmatprep.subr.mxu0 0.0
    %688 = vmatpush1.xpose.msra.mxu0 0.0
    %689 = vmatprep.subr.mxu0 0.0
    %690 = vmatpush1.xpose.msra.mxu0 0.0
    %691 = vmatprep.subr.mxu0 0.0
    %692 = vmatpush1.xpose.msra.mxu0 0.0
    %693 = vmatprep.subr.mxu0 0.0
    %694 = vmatpush1.xpose.msra.mxu0 0.0
    %695 = vmatprep.subr.mxu0 0.0
    %696 = vmatpush1.xpose.msra.mxu0 0.0
    %697 = vmatprep.subr.mxu0 0.0
    %698 = vmatpush1.xpose.msra.mxu0 0.0
    %699 = vmatprep.subr.mxu0 0.0
    %700 = vmatpush1.xpose.msra.mxu0 0.0
    %701 = vmatprep.subr.mxu0 0.0
    %702 = vmatpush1.xpose.msra.mxu0 0.0
    %703 = vmatprep.subr.mxu0 0.0
    %704 = vmatpush1.xpose.msra.mxu0 0.0
    %705 = vmatprep.subr.mxu0 0.0
    %706 = vmatpush1.xpose.msra.mxu0 0.0
    %707 = vmatprep.subr.mxu0 0.0
    %708 = vmatpush1.xpose.msra.mxu0 %v675
    %709 = vmatprep.subr.mxu0 0.0
    %710 = vmatpush2.xpose.msra.mxu0 0.0
    %711 = vmatprep.subr.mxu0 0.0
    %712 = vmatpush2.xpose.msra.mxu0 0.0
    %713 = vmatprep.subr.mxu0 0.0
    %714 = vmatpush2.xpose.msra.mxu0 0.0
    %715 = vmatprep.subr.mxu0 0.0
    %716 = vmatpush2.xpose.msra.mxu0 0.0
    %717 = vmatprep.subr.mxu0 0.0
    %718 = vmatpush2.xpose.msra.mxu0 0.0
    %719 = vmatprep.subr.mxu0 0.0
    %720 = vmatpush2.xpose.msra.mxu0 0.0
    %721 = vmatprep.subr.mxu0 0.0
    %722 = vmatpush2.xpose.msra.mxu0 0.0
    %723 = vmatprep.subr.mxu0 0.0
    %724 = vmatpush2.xpose.msra.mxu0 0.0
    %725 = vmatprep.subr.mxu0 0.0
    %726 = vmatpush2.xpose.msra.mxu0 0.0
    %727 = vmatprep.subr.mxu0 0.0
    %728 = vmatpush2.xpose.msra.mxu0 0.0
    %729 = vmatprep.subr.mxu0 0.0
    %730 = vmatpush2.xpose.msra.mxu0 0.0
    %731 = vmatprep.subr.mxu0 0.0
    %732 = vmatpush2.xpose.msra.mxu0 0.0
    %733 = vmatprep.subr.mxu0 0.0
    %734 = vmatpush2.xpose.msra.mxu0 0.0
    %735 = vmatprep.subr.mxu0 0.0
    %736 = vmatpush2.xpose.msra.mxu0 0.0
    %737 = vmatprep.subr.mxu0 0.0
    %738 = vmatpush2.xpose.msra.mxu0 0.0
    %739 = vmatprep.subr.mxu0 0.0
    %740 = vmatpush2.xpose.msra.mxu0 0.0
    %741 = vmatprep.mubr.f32.mxu0 0.0
    %742 = vmatmul.mubr.f32.gmra.mxu0 %v673
    %v743 = vpop.f32.mrf.mxu0
    %v744 = vadd.f32 0.0, %v743
    %v745 = vpop.f32.mrf.mxu0
    %746 = vdwg.mxu0
    %v747 = vmul.f32 %v667, 4.0
    %v748 = vmul.f32 %v744, 4.0
    %vm749 = vcmask 64512
    %v750 = vsel %vm749, %v747, -inf
    %v751 = vsel %vm749, %v748, -inf
    %v752 = vmax.f32 %v750, %v751
    %v753 = vsub.f32 %v747, %v752
    %v754 = vsub.f32 %v748, %v752
    %v755 = vmul.f32 %v753, 1.442695
    %v756 = vpow.pop %v755
    %v757 = vmul.f32 %v754, 1.442695
    %v758 = vpow.pop %v757
    %v759 = vsel %vm749, %v756, 0.0
    %v760 = vsel %vm749, %v758, 0.0
    %v761 = vadd.f32 %v759, %v760
    %v762 = vrcp.pop %v761
    %v763 = vmul.f32 %v756, %v762
    %v764 = vmul.f32 %v758, %v762
    %v766 = vsel %vm749, %v763, 0
    %768 = vmatprep.subr.mxu0 0.0
    %769 = vmatpush1.msra.mxu0 0.0
    %770 = vmatprep.subr.mxu0 0.0
    %771 = vmatpush1.msra.mxu0 0.0
    %772 = vmatprep.subr.mxu0 0.0
    %773 = vmatpush1.msra.mxu0 0.0
    %774 = vmatprep.subr.mxu0 0.0
    %775 = vmatpush1.msra.mxu0 0.0
    %776 = vmatprep.subr.mxu0 0.0
    %777 = vmatpush1.msra.mxu0 0.0
    %778 = vmatprep.subr.mxu0 0.0
    %779 = vmatpush1.msra.mxu0 0.0
    %780 = vmatprep.subr.mxu0 0.0
    %781 = vmatpush1.msra.mxu0 0.0
    %782 = vmatprep.subr.mxu0 0.0
    %783 = vmatpush1.msra.mxu0 0.0
    %784 = vmatprep.subr.mxu0 0.0
    %785 = vmatpush1.msra.mxu0 0.0
    %786 = vmatprep.subr.mxu0 0.0
    %787 = vmatpush1.msra.mxu0 0.0
    %788 = vmatprep.subr.mxu0 0.0
    %789 = vmatpush1.msra.mxu0 0.0
    %790 = vmatprep.subr.mxu0 0.0
    %791 = vmatpush1.msra.mxu0 0.0
    %792 = vmatprep.subr.mxu0 0.0
    %793 = vmatpush1.msra.mxu0 0.0
    %794 = vmatprep.subr.mxu0 0.0
    %795 = vmatpush1.msra.mxu0 0.0
    %796 = vmatprep.subr.mxu0 0.0
    %797 = vmatpush1.msra.mxu0 0.0
    %798 = vmatprep.subr.mxu0 0.0
    %799 = vmatpush1.msra.mxu0 %v584
    %800 = vmatprep.subr.mxu0 0.0
    %801 = vmatpush2.msra.mxu0 0.0
    %802 = vmatprep.subr.mxu0 0.0
    %803 = vmatpush2.msra.mxu0 0.0
    %804 = vmatprep.subr.mxu0 0.0
    %805 = vmatpush2.msra.mxu0 0.0
    %806 = vmatprep.subr.mxu0 0.0
    %807 = vmatpush2.msra.mxu0 0.0
    %808 = vmatprep.subr.mxu0 0.0
    %809 = vmatpush2.msra.mxu0 0.0
    %810 = vmatprep.subr.mxu0 0.0
    %811 = vmatpush2.msra.mxu0 0.0
    %812 = vmatprep.subr.mxu0 0.0
    %813 = vmatpush2.msra.mxu0 0.0
    %814 = vmatprep.subr.mxu0 0.0
    %815 = vmatpush2.msra.mxu0 0.0
    %816 = vmatprep.subr.mxu0 0.0
    %817 = vmatpush2.msra.mxu0 0.0
    %818 = vmatprep.subr.mxu0 0.0
    %819 = vmatpush2.msra.mxu0 0.0
    %820 = vmatprep.subr.mxu0 0.0
    %821 = vmatpush2.msra.mxu0 0.0
    %822 = vmatprep.subr.mxu0 0.0
    %823 = vmatpush2.msra.mxu0 0.0
    %824 = vmatprep.subr.mxu0 0.0
    %825 = vmatpush2.msra.mxu0 0.0
    %826 = vmatprep.subr.mxu0 0.0
    %827 = vmatpush2.msra.mxu0 0.0
    %828 = vmatprep.subr.mxu0 0.0
    %829 = vmatpush2.msra.mxu0 0.0
    %830 = vmatprep.subr.mxu0 0.0
    %831 = vmatpush2.msra.mxu0 0.0
    %832 = vmatprep.mubr.f32.mxu0 0.0
    %833 = vmatmul.mubr.f32.gmra.mxu0 %v766
    %v834 = vpop.f32.mrf.mxu0
    %v835 = vadd.f32 0.0, %v834
    %v836 = vpop.f32.mrf.mxu0
    %837 = vdwg.mxu0
    %v839 = vsel %vm749, %v764, 0
    %841 = vmatprep.subr.mxu0 0.0
    %842 = vmatpush1.msra.mxu0 0.0
    %843 = vmatprep.subr.mxu0 0.0
    %844 = vmatpush1.msra.mxu0 0.0
    %845 = vmatprep.subr.mxu0 0.0
    %846 = vmatpush1.msra.mxu0 0.0
    %847 = vmatprep.subr.mxu0 0.0
    %848 = vmatpush1.msra.mxu0 0.0
    %849 = vmatprep.subr.mxu0 0.0
    %850 = vmatpush1.msra.mxu0 0.0
    %851 = vmatprep.subr.mxu0 0.0
    %852 = vmatpush1.msra.mxu0 0.0
    %853 = vmatprep.subr.mxu0 0.0
    %854 = vmatpush1.msra.mxu0 0.0
    %855 = vmatprep.subr.mxu0 0.0
    %856 = vmatpush1.msra.mxu0 0.0
    %857 = vmatprep.subr.mxu0 0.0
    %858 = vmatpush1.msra.mxu0 0.0
    %859 = vmatprep.subr.mxu0 0.0
    %860 = vmatpush1.msra.mxu0 0.0
    %861 = vmatprep.subr.mxu0 0.0
    %862 = vmatpush1.msra.mxu0 0.0
    %863 = vmatprep.subr.mxu0 0.0
    %864 = vmatpush1.msra.mxu0 0.0
    %865 = vmatprep.subr.mxu0 0.0
    %866 = vmatpush1.msra.mxu0 0.0
    %867 = vmatprep.subr.mxu0 0.0
    %868 = vmatpush1.msra.mxu0 0.0
    %869 = vmatprep.subr.mxu0 0.0
    %870 = vmatpush1.msra.mxu0 0.0
    %871 = vmatprep.subr.mxu0 0.0
    %872 = vmatpush1.msra.mxu0 %v590
    %873 = vmatprep.subr.mxu0 0.0
    %874 = vmatpush2.msra.mxu0 0.0
    %875 = vmatprep.subr.mxu0 0.0
    %876 = vmatpush2.msra.mxu0 0.0
    %877 = vmatprep.subr.mxu0 0.0
    %878 = vmatpush2.msra.mxu0 0.0
    %879 = vmatprep.subr.mxu0 0.0
    %880 = vmatpush2.msra.mxu0 0.0
    %881 = vmatprep.subr.mxu0 0.0
    %882 = vmatpush2.msra.mxu0 0.0
    %883 = vmatprep.subr.mxu0 0.0
    %884 = vmatpush2.msra.mxu0 0.0
    %885 = vmatprep.subr.mxu0 0.0
    %886 = vmatpush2.msra.mxu0 0.0
    %887 = vmatprep.subr.mxu0 0.0
    %888 = vmatpush2.msra.mxu0 0.0
    %889 = vmatprep.subr.mxu0 0.0
    %890 = vmatpush2.msra.mxu0 0.0
    %891 = vmatprep.subr.mxu0 0.0
    %892 = vmatpush2.msra.mxu0 0.0
    %893 = vmatprep.subr.mxu0 0.0
    %894 = vmatpush2.msra.mxu0 0.0
    %895 = vmatprep.subr.mxu0 0.0
    %896 = vmatpush2.msra.mxu0 0.0
    %897 = vmatprep.subr.mxu0 0.0
    %898 = vmatpush2.msra.mxu0 0.0
    %899 = vmatprep.subr.mxu0 0.0
    %900 = vmatpush2.msra.mxu0 0.0
    %901 = vmatprep.subr.mxu0 0.0
    %902 = vmatpush2.msra.mxu0 0.0
    %903 = vmatprep.subr.mxu0 0.0
    %904 = vmatpush2.msra.mxu0 0.0
    %905 = vmatprep.mubr.f32.mxu0 0.0
    %906 = vmatmul.mubr.f32.gmra.mxu0 %v839
    %v907 = vpop.f32.mrf.mxu0
    %v908 = vadd.f32 0.0, %v907
    %v909 = vpop.f32.mrf.mxu0
    %910 = vdwg.mxu0
    %911 = vst.msk [vmem:[#allocation2] sm:$0xff] %vm595, %v835
    %912 = vst.msk [vmem:[#allocation2 + $0x8] sm:$0xff] %vm595, %v908
    %913 = vrot.lane.b32.xlu0 %v582, 112
    %v914 = vpop.permute.xlu0 %913
    %915 = vrot.lane.b32.xlu0 %v582, 48
    %v916 = vpop.permute.xlu0 %915
    %v917 = vsel %vm595, %v914, 0
    %v919 = vsel %vm595, %v916, 0
    %921 = vmatprep.subr.mxu0 0.0
    %922 = vmatpush1.xpose.msra.mxu0 0.0
    %923 = vmatprep.subr.mxu0 0.0
    %924 = vmatpush1.xpose.msra.mxu0 0.0
    %925 = vmatprep.subr.mxu0 0.0
    %926 = vmatpush1.xpose.msra.mxu0 0.0
    %927 = vmatprep.subr.mxu0 0.0
    %928 = vmatpush1.xpose.msra.mxu0 0.0
    %929 = vmatprep.subr.mxu0 0.0
    %930 = vmatpush1.xpose.msra.mxu0 0.0
    %931 = vmatprep.subr.mxu0 0.0
    %932 = vmatpush1.xpose.msra.mxu0 0.0
    %933 = vmatprep.subr.mxu0 0.0
    %934 = vmatpush1.xpose.msra.mxu0 0.0
    %935 = vmatprep.subr.mxu0 0.0
    %936 = vmatpush1.xpose.msra.mxu0 0.0
    %937 = vmatprep.subr.mxu0 0.0
    %938 = vmatpush1.xpose.msra.mxu0 0.0
    %939 = vmatprep.subr.mxu0 0.0
    %940 = vmatpush1.xpose.msra.mxu0 0.0
    %941 = vmatprep.subr.mxu0 0.0
    %942 = vmatpush1.xpose.msra.mxu0 0.0
    %943 = vmatprep.subr.mxu0 0.0
    %944 = vmatpush1.xpose.msra.mxu0 0.0
    %945 = vmatprep.subr.mxu0 0.0
    %946 = vmatpush1.xpose.msra.mxu0 0.0
    %947 = vmatprep.subr.mxu0 0.0
    %948 = vmatpush1.xpose.msra.mxu0 0.0
    %949 = vmatprep.subr.mxu0 0.0
    %950 = vmatpush1.xpose.msra.mxu0 0.0
    %951 = vmatprep.subr.mxu0 0.0
    %952 = vmatpush1.xpose.msra.mxu0 %v919
    %953 = vmatprep.subr.mxu0 0.0
    %954 = vmatpush2.xpose.msra.mxu0 0.0
    %955 = vmatprep.subr.mxu0 0.0
    %956 = vmatpush2.xpose.msra.mxu0 0.0
    %957 = vmatprep.subr.mxu0 0.0
    %958 = vmatpush2.xpose.msra.mxu0 0.0
    %959 = vmatprep.subr.mxu0 0.0
    %960 = vmatpush2.xpose.msra.mxu0 0.0
    %961 = vmatprep.subr.mxu0 0.0
    %962 = vmatpush2.xpose.msra.mxu0 0.0
    %963 = vmatprep.subr.mxu0 0.0
    %964 = vmatpush2.xpose.msra.mxu0 0.0
    %965 = vmatprep.subr.mxu0 0.0
    %966 = vmatpush2.xpose.msra.mxu0 0.0
    %967 = vmatprep.subr.mxu0 0.0
    %968 = vmatpush2.xpose.msra.mxu0 0.0
    %969 = vmatprep.subr.mxu0 0.0
    %970 = vmatpush2.xpose.msra.mxu0 0.0
    %971 = vmatprep.subr.mxu0 0.0
    %972 = vmatpush2.xpose.msra.mxu0 0.0
    %973 = vmatprep.subr.mxu0 0.0
    %974 = vmatpush2.xpose.msra.mxu0 0.0
    %975 = vmatprep.subr.mxu0 0.0
    %976 = vmatpush2.xpose.msra.mxu0 0.0
    %977 = vmatprep.subr.mxu0 0.0
    %978 = vmatpush2.xpose.msra.mxu0 0.0
    %979 = vmatprep.subr.mxu0 0.0
    %980 = vmatpush2.xpose.msra.mxu0 0.0
    %981 = vmatprep.subr.mxu0 0.0
    %982 = vmatpush2.xpose.msra.mxu0 0.0
    %983 = vmatprep.subr.mxu0 0.0
    %984 = vmatpush2.xpose.msra.mxu0 0.0
    %985 = vmatprep.mubr.f32.mxu0 0.0
    %986 = vmatmul.mubr.f32.gmra.mxu0 %v917
    %v987 = vpop.f32.mrf.mxu0
    %v988 = vadd.f32 0.0, %v987
    %v989 = vpop.f32.mrf.mxu0
    %990 = vdwg.mxu0
    %991 = vrot.lane.b32.xlu0 %v588, 112
    %v992 = vpop.permute.xlu0 %991
    %993 = vrot.lane.b32.xlu0 %v588, 48
    %v994 = vpop.permute.xlu0 %993
    %v995 = vsel %vm595, %v992, 0
    %v997 = vsel %vm595, %v994, 0
    %999 = vmatprep.subr.mxu0 0.0
    %1000 = vmatpush1.xpose.msra.mxu0 0.0
    %1001 = vmatprep.subr.mxu0 0.0
    %1002 = vmatpush1.xpose.msra.mxu0 0.0
    %1003 = vmatprep.subr.mxu0 0.0
    %1004 = vmatpush1.xpose.msra.mxu0 0.0
    %1005 = vmatprep.subr.mxu0 0.0
    %1006 = vmatpush1.xpose.msra.mxu0 0.0
    %1007 = vmatprep.subr.mxu0 0.0
    %1008 = vmatpush1.xpose.msra.mxu0 0.0
    %1009 = vmatprep.subr.mxu0 0.0
    %1010 = vmatpush1.xpose.msra.mxu0 0.0
    %1011 = vmatprep.subr.mxu0 0.0
    %1012 = vmatpush1.xpose.msra.mxu0 0.0
    %1013 = vmatprep.subr.mxu0 0.0
    %1014 = vmatpush1.xpose.msra.mxu0 0.0
    %1015 = vmatprep.subr.mxu0 0.0
    %1016 = vmatpush1.xpose.msra.mxu0 0.0
    %1017 = vmatprep.subr.mxu0 0.0
    %1018 = vmatpush1.xpose.msra.mxu0 0.0
    %1019 = vmatprep.subr.mxu0 0.0
    %1020 = vmatpush1.xpose.msra.mxu0 0.0
    %1021 = vmatprep.subr.mxu0 0.0
    %1022 = vmatpush1.xpose.msra.mxu0 0.0
    %1023 = vmatprep.subr.mxu0 0.0
    %1024 = vmatpush1.xpose.msra.mxu0 0.0
    %1025 = vmatprep.subr.mxu0 0.0
    %1026 = vmatpush1.xpose.msra.mxu0 0.0
    %1027 = vmatprep.subr.mxu0 0.0
    %1028 = vmatpush1.xpose.msra.mxu0 0.0
    %1029 = vmatprep.subr.mxu0 0.0
    %1030 = vmatpush1.xpose.msra.mxu0 %v997
    %1031 = vmatprep.subr.mxu0 0.0
    %1032 = vmatpush2.xpose.msra.mxu0 0.0
    %1033 = vmatprep.subr.mxu0 0.0
    %1034 = vmatpush2.xpose.msra.mxu0 0.0
    %1035 = vmatprep.subr.mxu0 0.0
    %1036 = vmatpush2.xpose.msra.mxu0 0.0
    %1037 = vmatprep.subr.mxu0 0.0
    %1038 = vmatpush2.xpose.msra.mxu0 0.0
    %1039 = vmatprep.subr.mxu0 0.0
    %1040 = vmatpush2.xpose.msra.mxu0 0.0
    %1041 = vmatprep.subr.mxu0 0.0
    %1042 = vmatpush2.xpose.msra.mxu0 0.0
    %1043 = vmatprep.subr.mxu0 0.0
    %1044 = vmatpush2.xpose.msra.mxu0 0.0
    %1045 = vmatprep.subr.mxu0 0.0
    %1046 = vmatpush2.xpose.msra.mxu0 0.0
    %1047 = vmatprep.subr.mxu0 0.0
    %1048 = vmatpush2.xpose.msra.mxu0 0.0
    %1049 = vmatprep.subr.mxu0 0.0
    %1050 = vmatpush2.xpose.msra.mxu0 0.0
    %1051 = vmatprep.subr.mxu0 0.0
    %1052 = vmatpush2.xpose.msra.mxu0 0.0
    %1053 = vmatprep.subr.mxu0 0.0
    %1054 = vmatpush2.xpose.msra.mxu0 0.0
    %1055 = vmatprep.subr.mxu0 0.0
    %1056 = vmatpush2.xpose.msra.mxu0 0.0
    %1057 = vmatprep.subr.mxu0 0.0
    %1058 = vmatpush2.xpose.msra.mxu0 0.0
    %1059 = vmatprep.subr.mxu0 0.0
    %1060 = vmatpush2.xpose.msra.mxu0 0.0
    %1061 = vmatprep.subr.mxu0 0.0
    %1062 = vmatpush2.xpose.msra.mxu0 0.0
    %1063 = vmatprep.mubr.f32.mxu0 0.0
    %1064 = vmatmul.mubr.f32.gmra.mxu0 %v995
    %v1065 = vpop.f32.mrf.mxu0
    %v1066 = vadd.f32 0.0, %v1065
    %v1067 = vpop.f32.mrf.mxu0
    %1068 = vdwg.mxu0
    %v1069 = vmul.f32 %v988, 4.0
    %v1070 = vmul.f32 %v1066, 4.0
    %v1071 = vsel %vm749, %v1069, -inf
    %v1072 = vsel %vm749, %v1070, -inf
    %v1073 = vmax.f32 %v1071, %v1072
    %v1074 = vsub.f32 %v1069, %v1073
    %v1075 = vsub.f32 %v1070, %v1073
    %v1076 = vmul.f32 %v1074, 1.442695
    %v1077 = vpow.pop %v1076
    %v1078 = vmul.f32 %v1075, 1.442695
    %v1079 = vpow.pop %v1078
    %v1080 = vsel %vm749, %v1077, 0.0
    %v1081 = vsel %vm749, %v1079, 0.0
    %v1082 = vadd.f32 %v1080, %v1081
    %v1083 = vrcp.pop %v1082
    %v1084 = vmul.f32 %v1077, %v1083
    %v1085 = vmul.f32 %v1079, %v1083
    %1087 = vrot.lane.b32.xlu0 %v584, 112
    %v1088 = vpop.permute.xlu0 %1087
    %v1091 = vsel %vm749, %v1084, 0
    %1093 = vmatprep.subr.mxu0 0.0
    %1094 = vmatpush1.msra.mxu0 0.0
    %1095 = vmatprep.subr.mxu0 0.0
    %1096 = vmatpush1.msra.mxu0 0.0
    %1097 = vmatprep.subr.mxu0 0.0
    %1098 = vmatpush1.msra.mxu0 0.0
    %1099 = vmatprep.subr.mxu0 0.0
    %1100 = vmatpush1.msra.mxu0 0.0
    %1101 = vmatprep.subr.mxu0 0.0
    %1102 = vmatpush1.msra.mxu0 0.0
    %1103 = vmatprep.subr.mxu0 0.0
    %1104 = vmatpush1.msra.mxu0 0.0
    %1105 = vmatprep.subr.mxu0 0.0
    %1106 = vmatpush1.msra.mxu0 0.0
    %1107 = vmatprep.subr.mxu0 0.0
    %1108 = vmatpush1.msra.mxu0 0.0
    %1109 = vmatprep.subr.mxu0 0.0
    %1110 = vmatpush1.msra.mxu0 0.0
    %1111 = vmatprep.subr.mxu0 0.0
    %1112 = vmatpush1.msra.mxu0 0.0
    %1113 = vmatprep.subr.mxu0 0.0
    %1114 = vmatpush1.msra.mxu0 0.0
    %1115 = vmatprep.subr.mxu0 0.0
    %1116 = vmatpush1.msra.mxu0 0.0
    %1117 = vmatprep.subr.mxu0 0.0
    %1118 = vmatpush1.msra.mxu0 0.0
    %1119 = vmatprep.subr.mxu0 0.0
    %1120 = vmatpush1.msra.mxu0 0.0
    %1121 = vmatprep.subr.mxu0 0.0
    %1122 = vmatpush1.msra.mxu0 0.0
    %1123 = vmatprep.subr.mxu0 0.0
    %1124 = vmatpush1.msra.mxu0 %v1088
    %1125 = vmatprep.subr.mxu0 0.0
    %1126 = vmatpush2.msra.mxu0 0.0
    %1127 = vmatprep.subr.mxu0 0.0
    %1128 = vmatpush2.msra.mxu0 0.0
    %1129 = vmatprep.subr.mxu0 0.0
    %1130 = vmatpush2.msra.mxu0 0.0
    %1131 = vmatprep.subr.mxu0 0.0
    %1132 = vmatpush2.msra.mxu0 0.0
    %1133 = vmatprep.subr.mxu0 0.0
    %1134 = vmatpush2.msra.mxu0 0.0
    %1135 = vmatprep.subr.mxu0 0.0
    %1136 = vmatpush2.msra.mxu0 0.0
    %1137 = vmatprep.subr.mxu0 0.0
    %1138 = vmatpush2.msra.mxu0 0.0
    %1139 = vmatprep.subr.mxu0 0.0
    %1140 = vmatpush2.msra.mxu0 0.0
    %1141 = vmatprep.subr.mxu0 0.0
    %1142 = vmatpush2.msra.mxu0 0.0
    %1143 = vmatprep.subr.mxu0 0.0
    %1144 = vmatpush2.msra.mxu0 0.0
    %1145 = vmatprep.subr.mxu0 0.0
    %1146 = vmatpush2.msra.mxu0 0.0
    %1147 = vmatprep.subr.mxu0 0.0
    %1148 = vmatpush2.msra.mxu0 0.0
    %1149 = vmatprep.subr.mxu0 0.0
    %1150 = vmatpush2.msra.mxu0 0.0
    %1151 = vmatprep.subr.mxu0 0.0
    %1152 = vmatpush2.msra.mxu0 0.0
    %1153 = vmatprep.subr.mxu0 0.0
    %1154 = vmatpush2.msra.mxu0 0.0
    %1155 = vmatprep.subr.mxu0 0.0
    %1156 = vmatpush2.msra.mxu0 0.0
    %1157 = vmatprep.mubr.f32.mxu0 0.0
    %1158 = vmatmul.mubr.f32.gmra.mxu0 %v1091
    %v1159 = vpop.f32.mrf.mxu0
    %v1160 = vadd.f32 0.0, %v1159
    %v1161 = vpop.f32.mrf.mxu0
    %1162 = vdwg.mxu0
    %1164 = vrot.lane.b32.xlu0 %v590, 112
    %v1165 = vpop.permute.xlu0 %1164
    %v1168 = vsel %vm749, %v1085, 0
    %1170 = vmatprep.subr.mxu0 0.0
    %1171 = vmatpush1.msra.mxu0 0.0
    %1172 = vmatprep.subr.mxu0 0.0
    %1173 = vmatpush1.msra.mxu0 0.0
    %1174 = vmatprep.subr.mxu0 0.0
    %1175 = vmatpush1.msra.mxu0 0.0
    %1176 = vmatprep.subr.mxu0 0.0
    %1177 = vmatpush1.msra.mxu0 0.0
    %1178 = vmatprep.subr.mxu0 0.0
    %1179 = vmatpush1.msra.mxu0 0.0
    %1180 = vmatprep.subr.mxu0 0.0
    %1181 = vmatpush1.msra.mxu0 0.0
    %1182 = vmatprep.subr.mxu0 0.0
    %1183 = vmatpush1.msra.mxu0 0.0
    %1184 = vmatprep.subr.mxu0 0.0
    %1185 = vmatpush1.msra.mxu0 0.0
    %1186 = vmatprep.subr.mxu0 0.0
    %1187 = vmatpush1.msra.mxu0 0.0
    %1188 = vmatprep.subr.mxu0 0.0
    %1189 = vmatpush1.msra.mxu0 0.0
    %1190 = vmatprep.subr.mxu0 0.0
    %1191 = vmatpush1.msra.mxu0 0.0
    %1192 = vmatprep.subr.mxu0 0.0
    %1193 = vmatpush1.msra.mxu0 0.0
    %1194 = vmatprep.subr.mxu0 0.0
    %1195 = vmatpush1.msra.mxu0 0.0
    %1196 = vmatprep.subr.mxu0 0.0
    %1197 = vmatpush1.msra.mxu0 0.0
    %1198 = vmatprep.subr.mxu0 0.0
    %1199 = vmatpush1.msra.mxu0 0.0
    %1200 = vmatprep.subr.mxu0 0.0
    %1201 = vmatpush1.msra.mxu0 %v1165
    %1202 = vmatprep.subr.mxu0 0.0
    %1203 = vmatpush2.msra.mxu0 0.0
    %1204 = vmatprep.subr.mxu0 0.0
    %1205 = vmatpush2.msra.mxu0 0.0
    %1206 = vmatprep.subr.mxu0 0.0
    %1207 = vmatpush2.msra.mxu0 0.0
    %1208 = vmatprep.subr.mxu0 0.0
    %1209 = vmatpush2.msra.mxu0 0.0
    %1210 = vmatprep.subr.mxu0 0.0
    %1211 = vmatpush2.msra.mxu0 0.0
    %1212 = vmatprep.subr.mxu0 0.0
    %1213 = vmatpush2.msra.mxu0 0.0
    %1214 = vmatprep.subr.mxu0 0.0
    %1215 = vmatpush2.msra.mxu0 0.0
    %1216 = vmatprep.subr.mxu0 0.0
    %1217 = vmatpush2.msra.mxu0 0.0
    %1218 = vmatprep.subr.mxu0 0.0
    %1219 = vmatpush2.msra.mxu0 0.0
    %1220 = vmatprep.subr.mxu0 0.0
    %1221 = vmatpush2.msra.mxu0 0.0
    %1222 = vmatprep.subr.mxu0 0.0
    %1223 = vmatpush2.msra.mxu0 0.0
    %1224 = vmatprep.subr.mxu0 0.0
    %1225 = vmatpush2.msra.mxu0 0.0
    %1226 = vmatprep.subr.mxu0 0.0
    %1227 = vmatpush2.msra.mxu0 0.0
    %1228 = vmatprep.subr.mxu0 0.0
    %1229 = vmatpush2.msra.mxu0 0.0
    %1230 = vmatprep.subr.mxu0 0.0
    %1231 = vmatpush2.msra.mxu0 0.0
    %1232 = vmatprep.subr.mxu0 0.0
    %1233 = vmatpush2.msra.mxu0 0.0
    %1234 = vmatprep.mubr.f32.mxu0 0.0
    %1235 = vmatmul.mubr.f32.gmra.mxu0 %v1168
    %v1236 = vpop.f32.mrf.mxu0
    %v1237 = vadd.f32 0.0, %v1236
    %v1238 = vpop.f32.mrf.mxu0
    %1239 = vdwg.mxu0
    %1242 = vrot.lane.b32.xlu0 %v1160, 16
    %v1243 = vpop.permute.xlu0 %1242
    %1244 = vrot.lane.b32.xlu0 %v1237, 16
    %v1245 = vpop.permute.xlu0 %1244
    %vm1248 = vcmask 261248
    %1249 = vst.msk [vmem:[#allocation2] sm:$0xff] %vm1248, %v1243
    %1250 = vst.msk [vmem:[#allocation2 + $0x8] sm:$0xff] %vm1248, %v1245
    %1251 = vrot.lane.b32.xlu0 %v582, 96
    %v1252 = vpop.permute.xlu0 %1251
    %1253 = vrot.lane.b32.xlu0 %v582, 32
    %v1254 = vpop.permute.xlu0 %1253
    %v1255 = vsel %vm595, %v1252, 0
    %v1257 = vsel %vm595, %v1254, 0
    %1259 = vmatprep.subr.mxu0 0.0
    %1260 = vmatpush1.xpose.msra.mxu0 0.0
    %1261 = vmatprep.subr.mxu0 0.0
    %1262 = vmatpush1.xpose.msra.mxu0 0.0
    %1263 = vmatprep.subr.mxu0 0.0
    %1264 = vmatpush1.xpose.msra.mxu0 0.0
    %1265 = vmatprep.subr.mxu0 0.0
    %1266 = vmatpush1.xpose.msra.mxu0 0.0
    %1267 = vmatprep.subr.mxu0 0.0
    %1268 = vmatpush1.xpose.msra.mxu0 0.0
    %1269 = vmatprep.subr.mxu0 0.0
    %1270 = vmatpush1.xpose.msra.mxu0 0.0
    %1271 = vmatprep.subr.mxu0 0.0
    %1272 = vmatpush1.xpose.msra.mxu0 0.0
    %1273 = vmatprep.subr.mxu0 0.0
    %1274 = vmatpush1.xpose.msra.mxu0 0.0
    %1275 = vmatprep.subr.mxu0 0.0
    %1276 = vmatpush1.xpose.msra.mxu0 0.0
    %1277 = vmatprep.subr.mxu0 0.0
    %1278 = vmatpush1.xpose.msra.mxu0 0.0
    %1279 = vmatprep.subr.mxu0 0.0
    %1280 = vmatpush1.xpose.msra.mxu0 0.0
    %1281 = vmatprep.subr.mxu0 0.0
    %1282 = vmatpush1.xpose.msra.mxu0 0.0
    %1283 = vmatprep.subr.mxu0 0.0
    %1284 = vmatpush1.xpose.msra.mxu0 0.0
    %1285 = vmatprep.subr.mxu0 0.0
    %1286 = vmatpush1.xpose.msra.mxu0 0.0
    %1287 = vmatprep.subr.mxu0 0.0
    %1288 = vmatpush1.xpose.msra.mxu0 0.0
    %1289 = vmatprep.subr.mxu0 0.0
    %1290 = vmatpush1.xpose.msra.mxu0 %v1257
    %1291 = vmatprep.subr.mxu0 0.0
    %1292 = vmatpush2.xpose.msra.mxu0 0.0
    %1293 = vmatprep.subr.mxu0 0.0
    %1294 = vmatpush2.xpose.msra.mxu0 0.0
    %1295 = vmatprep.subr.mxu0 0.0
    %1296 = vmatpush2.xpose.msra.mxu0 0.0
    %1297 = vmatprep.subr.mxu0 0.0
    %1298 = vmatpush2.xpose.msra.mxu0 0.0
    %1299 = vmatprep.subr.mxu0 0.0
    %1300 = vmatpush2.xpose.msra.mxu0 0.0
    %1301 = vmatprep.subr.mxu0 0.0
    %1302 = vmatpush2.xpose.msra.mxu0 0.0
    %1303 = vmatprep.subr.mxu0 0.0
    %1304 = vmatpush2.xpose.msra.mxu0 0.0
    %1305 = vmatprep.subr.mxu0 0.0
    %1306 = vmatpush2.xpose.msra.mxu0 0.0
    %1307 = vmatprep.subr.mxu0 0.0
    %1308 = vmatpush2.xpose.msra.mxu0 0.0
    %1309 = vmatprep.subr.mxu0 0.0
    %1310 = vmatpush2.xpose.msra.mxu0 0.0
    %1311 = vmatprep.subr.mxu0 0.0
    %1312 = vmatpush2.xpose.msra.mxu0 0.0
    %1313 = vmatprep.subr.mxu0 0.0
    %1314 = vmatpush2.xpose.msra.mxu0 0.0
    %1315 = vmatprep.subr.mxu0 0.0
    %1316 = vmatpush2.xpose.msra.mxu0 0.0
    %1317 = vmatprep.subr.mxu0 0.0
    %1318 = vmatpush2.xpose.msra.mxu0 0.0
    %1319 = vmatprep.subr.mxu0 0.0
    %1320 = vmatpush2.xpose.msra.mxu0 0.0
    %1321 = vmatprep.subr.mxu0 0.0
    %1322 = vmatpush2.xpose.msra.mxu0 0.0
    %1323 = vmatprep.mubr.f32.mxu0 0.0
    %1324 = vmatmul.mubr.f32.gmra.mxu0 %v1255
    %v1325 = vpop.f32.mrf.mxu0
    %v1326 = vadd.f32 0.0, %v1325
    %v1327 = vpop.f32.mrf.mxu0
    %1328 = vdwg.mxu0
    %1329 = vrot.lane.b32.xlu0 %v588, 96
    %v1330 = vpop.permute.xlu0 %1329
    %1331 = vrot.lane.b32.xlu0 %v588, 32
    %v1332 = vpop.permute.xlu0 %1331
    %v1333 = vsel %vm595, %v1330, 0
    %v1335 = vsel %vm595, %v1332, 0
    %1337 = vmatprep.subr.mxu0 0.0
    %1338 = vmatpush1.xpose.msra.mxu0 0.0
    %1339 = vmatprep.subr.mxu0 0.0
    %1340 = vmatpush1.xpose.msra.mxu0 0.0
    %1341 = vmatprep.subr.mxu0 0.0
    %1342 = vmatpush1.xpose.msra.mxu0 0.0
    %1343 = vmatprep.subr.mxu0 0.0
    %1344 = vmatpush1.xpose.msra.mxu0 0.0
    %1345 = vmatprep.subr.mxu0 0.0
    %1346 = vmatpush1.xpose.msra.mxu0 0.0
    %1347 = vmatprep.subr.mxu0 0.0
    %1348 = vmatpush1.xpose.msra.mxu0 0.0
    %1349 = vmatprep.subr.mxu0 0.0
    %1350 = vmatpush1.xpose.msra.mxu0 0.0
    %1351 = vmatprep.subr.mxu0 0.0
    %1352 = vmatpush1.xpose.msra.mxu0 0.0
    %1353 = vmatprep.subr.mxu0 0.0
    %1354 = vmatpush1.xpose.msra.mxu0 0.0
    %1355 = vmatprep.subr.mxu0 0.0
    %1356 = vmatpush1.xpose.msra.mxu0 0.0
    %1357 = vmatprep.subr.mxu0 0.0
    %1358 = vmatpush1.xpose.msra.mxu0 0.0
    %1359 = vmatprep.subr.mxu0 0.0
    %1360 = vmatpush1.xpose.msra.mxu0 0.0
    %1361 = vmatprep.subr.mxu0 0.0
    %1362 = vmatpush1.xpose.msra.mxu0 0.0
    %1363 = vmatprep.subr.mxu0 0.0
    %1364 = vmatpush1.xpose.msra.mxu0 0.0
    %1365 = vmatprep.subr.mxu0 0.0
    %1366 = vmatpush1.xpose.msra.mxu0 0.0
    %1367 = vmatprep.subr.mxu0 0.0
    %1368 = vmatpush1.xpose.msra.mxu0 %v1335
    %1369 = vmatprep.subr.mxu0 0.0
    %1370 = vmatpush2.xpose.msra.mxu0 0.0
    %1371 = vmatprep.subr.mxu0 0.0
    %1372 = vmatpush2.xpose.msra.mxu0 0.0
    %1373 = vmatprep.subr.mxu0 0.0
    %1374 = vmatpush2.xpose.msra.mxu0 0.0
    %1375 = vmatprep.subr.mxu0 0.0
    %1376 = vmatpush2.xpose.msra.mxu0 0.0
    %1377 = vmatprep.subr.mxu0 0.0
    %1378 = vmatpush2.xpose.msra.mxu0 0.0
    %1379 = vmatprep.subr.mxu0 0.0
    %1380 = vmatpush2.xpose.msra.mxu0 0.0
    %1381 = vmatprep.subr.mxu0 0.0
    %1382 = vmatpush2.xpose.msra.mxu0 0.0
    %1383 = vmatprep.subr.mxu0 0.0
    %1384 = vmatpush2.xpose.msra.mxu0 0.0
    %1385 = vmatprep.subr.mxu0 0.0
    %1386 = vmatpush2.xpose.msra.mxu0 0.0
    %1387 = vmatprep.subr.mxu0 0.0
    %1388 = vmatpush2.xpose.msra.mxu0 0.0
    %1389 = vmatprep.subr.mxu0 0.0
    %1390 = vmatpush2.xpose.msra.mxu0 0.0
    %1391 = vmatprep.subr.mxu0 0.0
    %1392 = vmatpush2.xpose.msra.mxu0 0.0
    %1393 = vmatprep.subr.mxu0 0.0
    %1394 = vmatpush2.xpose.msra.mxu0 0.0
    %1395 = vmatprep.subr.mxu0 0.0
    %1396 = vmatpush2.xpose.msra.mxu0 0.0
    %1397 = vmatprep.subr.mxu0 0.0
    %1398 = vmatpush2.xpose.msra.mxu0 0.0
    %1399 = vmatprep.subr.mxu0 0.0
    %1400 = vmatpush2.xpose.msra.mxu0 0.0
    %1401 = vmatprep.mubr.f32.mxu0 0.0
    %1402 = vmatmul.mubr.f32.gmra.mxu0 %v1333
    %v1403 = vpop.f32.mrf.mxu0
    %v1404 = vadd.f32 0.0, %v1403
    %v1405 = vpop.f32.mrf.mxu0
    %1406 = vdwg.mxu0
    %v1407 = vmul.f32 %v1326, 4.0
    %v1408 = vmul.f32 %v1404, 4.0
    %v1409 = vsel %vm749, %v1407, -inf
    %v1410 = vsel %vm749, %v1408, -inf
    %v1411 = vmax.f32 %v1409, %v1410
    %v1412 = vsub.f32 %v1407, %v1411
    %v1413 = vsub.f32 %v1408, %v1411
    %v1414 = vmul.f32 %v1412, 1.442695
    %v1415 = vpow.pop %v1414
    %v1416 = vmul.f32 %v1413, 1.442695
    %v1417 = vpow.pop %v1416
    %v1418 = vsel %vm749, %v1415, 0.0
    %v1419 = vsel %vm749, %v1417, 0.0
    %v1420 = vadd.f32 %v1418, %v1419
    %v1421 = vrcp.pop %v1420
    %v1422 = vmul.f32 %v1415, %v1421
    %v1423 = vmul.f32 %v1417, %v1421
    %1424 = vrot.lane.b32.xlu0 %v584, 96
    %v1425 = vpop.permute.xlu0 %1424
    %v1428 = vsel %vm749, %v1422, 0
    %1430 = vmatprep.subr.mxu0 0.0
    %1431 = vmatpush1.msra.mxu0 0.0
    %1432 = vmatprep.subr.mxu0 0.0
    %1433 = vmatpush1.msra.mxu0 0.0
    %1434 = vmatprep.subr.mxu0 0.0
    %1435 = vmatpush1.msra.mxu0 0.0
    %1436 = vmatprep.subr.mxu0 0.0
    %1437 = vmatpush1.msra.mxu0 0.0
    %1438 = vmatprep.subr.mxu0 0.0
    %1439 = vmatpush1.msra.mxu0 0.0
    %1440 = vmatprep.subr.mxu0 0.0
    %1441 = vmatpush1.msra.mxu0 0.0
    %1442 = vmatprep.subr.mxu0 0.0
    %1443 = vmatpush1.msra.mxu0 0.0
    %1444 = vmatprep.subr.mxu0 0.0
    %1445 = vmatpush1.msra.mxu0 0.0
    %1446 = vmatprep.subr.mxu0 0.0
    %1447 = vmatpush1.msra.mxu0 0.0
    %1448 = vmatprep.subr.mxu0 0.0
    %1449 = vmatpush1.msra.mxu0 0.0
    %1450 = vmatprep.subr.mxu0 0.0
    %1451 = vmatpush1.msra.mxu0 0.0
    %1452 = vmatprep.subr.mxu0 0.0
    %1453 = vmatpush1.msra.mxu0 0.0
    %1454 = vmatprep.subr.mxu0 0.0
    %1455 = vmatpush1.msra.mxu0 0.0
    %1456 = vmatprep.subr.mxu0 0.0
    %1457 = vmatpush1.msra.mxu0 0.0
    %1458 = vmatprep.subr.mxu0 0.0
    %1459 = vmatpush1.msra.mxu0 0.0
    %1460 = vmatprep.subr.mxu0 0.0
    %1461 = vmatpush1.msra.mxu0 %v1425
    %1462 = vmatprep.subr.mxu0 0.0
    %1463 = vmatpush2.msra.mxu0 0.0
    %1464 = vmatprep.subr.mxu0 0.0
    %1465 = vmatpush2.msra.mxu0 0.0
    %1466 = vmatprep.subr.mxu0 0.0
    %1467 = vmatpush2.msra.mxu0 0.0
    %1468 = vmatprep.subr.mxu0 0.0
    %1469 = vmatpush2.msra.mxu0 0.0
    %1470 = vmatprep.subr.mxu0 0.0
    %1471 = vmatpush2.msra.mxu0 0.0
    %1472 = vmatprep.subr.mxu0 0.0
    %1473 = vmatpush2.msra.mxu0 0.0
    %1474 = vmatprep.subr.mxu0 0.0
    %1475 = vmatpush2.msra.mxu0 0.0
    %1476 = vmatprep.subr.mxu0 0.0
    %1477 = vmatpush2.msra.mxu0 0.0
    %1478 = vmatprep.subr.mxu0 0.0
    %1479 = vmatpush2.msra.mxu0 0.0
    %1480 = vmatprep.subr.mxu0 0.0
    %1481 = vmatpush2.msra.mxu0 0.0
    %1482 = vmatprep.subr.mxu0 0.0
    %1483 = vmatpush2.msra.mxu0 0.0
    %1484 = vmatprep.subr.mxu0 0.0
    %1485 = vmatpush2.msra.mxu0 0.0
    %1486 = vmatprep.subr.mxu0 0.0
    %1487 = vmatpush2.msra.mxu0 0.0
    %1488 = vmatprep.subr.mxu0 0.0
    %1489 = vmatpush2.msra.mxu0 0.0
    %1490 = vmatprep.subr.mxu0 0.0
    %1491 = vmatpush2.msra.mxu0 0.0
    %1492 = vmatprep.subr.mxu0 0.0
    %1493 = vmatpush2.msra.mxu0 0.0
    %1494 = vmatprep.mubr.f32.mxu0 0.0
    %1495 = vmatmul.mubr.f32.gmra.mxu0 %v1428
    %v1496 = vpop.f32.mrf.mxu0
    %v1497 = vadd.f32 0.0, %v1496
    %v1498 = vpop.f32.mrf.mxu0
    %1499 = vdwg.mxu0
    %1500 = vrot.lane.b32.xlu0 %v590, 96
    %v1501 = vpop.permute.xlu0 %1500
    %v1504 = vsel %vm749, %v1423, 0
    %1506 = vmatprep.subr.mxu0 0.0
    %1507 = vmatpush1.msra.mxu0 0.0
    %1508 = vmatprep.subr.mxu0 0.0
    %1509 = vmatpush1.msra.mxu0 0.0
    %1510 = vmatprep.subr.mxu0 0.0
    %1511 = vmatpush1.msra.mxu0 0.0
    %1512 = vmatprep.subr.mxu0 0.0
    %1513 = vmatpush1.msra.mxu0 0.0
    %1514 = vmatprep.subr.mxu0 0.0
    %1515 = vmatpush1.msra.mxu0 0.0
    %1516 = vmatprep.subr.mxu0 0.0
    %1517 = vmatpush1.msra.mxu0 0.0
    %1518 = vmatprep.subr.mxu0 0.0
    %1519 = vmatpush1.msra.mxu0 0.0
    %1520 = vmatprep.subr.mxu0 0.0
    %1521 = vmatpush1.msra.mxu0 0.0
    %1522 = vmatprep.subr.mxu0 0.0
    %1523 = vmatpush1.msra.mxu0 0.0
    %1524 = vmatprep.subr.mxu0 0.0
    %1525 = vmatpush1.msra.mxu0 0.0
    %1526 = vmatprep.subr.mxu0 0.0
    %1527 = vmatpush1.msra.mxu0 0.0
    %1528 = vmatprep.subr.mxu0 0.0
    %1529 = vmatpush1.msra.mxu0 0.0
    %1530 = vmatprep.subr.mxu0 0.0
    %1531 = vmatpush1.msra.mxu0 0.0
    %1532 = vmatprep.subr.mxu0 0.0
    %1533 = vmatpush1.msra.mxu0 0.0
    %1534 = vmatprep.subr.mxu0 0.0
    %1535 = vmatpush1.msra.mxu0 0.0
    %1536 = vmatprep.subr.mxu0 0.0
    %1537 = vmatpush1.msra.mxu0 %v1501
    %1538 = vmatprep.subr.mxu0 0.0
    %1539 = vmatpush2.msra.mxu0 0.0
    %1540 = vmatprep.subr.mxu0 0.0
    %1541 = vmatpush2.msra.mxu0 0.0
    %1542 = vmatprep.subr.mxu0 0.0
    %1543 = vmatpush2.msra.mxu0 0.0
    %1544 = vmatprep.subr.mxu0 0.0
    %1545 = vmatpush2.msra.mxu0 0.0
    %1546 = vmatprep.subr.mxu0 0.0
    %1547 = vmatpush2.msra.mxu0 0.0
    %1548 = vmatprep.subr.mxu0 0.0
    %1549 = vmatpush2.msra.mxu0 0.0
    %1550 = vmatprep.subr.mxu0 0.0
    %1551 = vmatpush2.msra.mxu0 0.0
    %1552 = vmatprep.subr.mxu0 0.0
    %1553 = vmatpush2.msra.mxu0 0.0
    %1554 = vmatprep.subr.mxu0 0.0
    %1555 = vmatpush2.msra.mxu0 0.0
    %1556 = vmatprep.subr.mxu0 0.0
    %1557 = vmatpush2.msra.mxu0 0.0
    %1558 = vmatprep.subr.mxu0 0.0
    %1559 = vmatpush2.msra.mxu0 0.0
    %1560 = vmatprep.subr.mxu0 0.0
    %1561 = vmatpush2.msra.mxu0 0.0
    %1562 = vmatprep.subr.mxu0 0.0
    %1563 = vmatpush2.msra.mxu0 0.0
    %1564 = vmatprep.subr.mxu0 0.0
    %1565 = vmatpush2.msra.mxu0 0.0
    %1566 = vmatprep.subr.mxu0 0.0
    %1567 = vmatpush2.msra.mxu0 0.0
    %1568 = vmatprep.subr.mxu0 0.0
    %1569 = vmatpush2.msra.mxu0 0.0
    %1570 = vmatprep.mubr.f32.mxu0 0.0
    %1571 = vmatmul.mubr.f32.gmra.mxu0 %v1504
    %v1572 = vpop.f32.mrf.mxu0
    %v1573 = vadd.f32 0.0, %v1572
    %v1574 = vpop.f32.mrf.mxu0
    %1575 = vdwg.mxu0
    %1578 = vrot.lane.b32.xlu0 %v1497, 32
    %v1579 = vpop.permute.xlu0 %1578
    %1580 = vrot.lane.b32.xlu0 %v1573, 32
    %v1581 = vpop.permute.xlu0 %1580
    %vm1584 = vcmask 392448
    %1585 = vst.msk [vmem:[#allocation2] sm:$0xff] %vm1584, %v1579
    %1586 = vst.msk [vmem:[#allocation2 + $0x8] sm:$0xff] %vm1584, %v1581
    %1587 = vrot.lane.b32.xlu0 %v582, 80
    %v1588 = vpop.permute.xlu0 %1587
    %1589 = vrot.lane.b32.xlu0 %v582, 16
    %v1590 = vpop.permute.xlu0 %1589
    %v1591 = vsel %vm595, %v1588, 0
    %v1593 = vsel %vm595, %v1590, 0
    %1595 = vmatprep.subr.mxu0 0.0
    %1596 = vmatpush1.xpose.msra.mxu0 0.0
    %1597 = vmatprep.subr.mxu0 0.0
    %1598 = vmatpush1.xpose.msra.mxu0 0.0
    %1599 = vmatprep.subr.mxu0 0.0
    %1600 = vmatpush1.xpose.msra.mxu0 0.0
    %1601 = vmatprep.subr.mxu0 0.0
    %1602 = vmatpush1.xpose.msra.mxu0 0.0
    %1603 = vmatprep.subr.mxu0 0.0
    %1604 = vmatpush1.xpose.msra.mxu0 0.0
    %1605 = vmatprep.subr.mxu0 0.0
    %1606 = vmatpush1.xpose.msra.mxu0 0.0
    %1607 = vmatprep.subr.mxu0 0.0
    %1608 = vmatpush1.xpose.msra.mxu0 0.0
    %1609 = vmatprep.subr.mxu0 0.0
    %1610 = vmatpush1.xpose.msra.mxu0 0.0
    %1611 = vmatprep.subr.mxu0 0.0
    %1612 = vmatpush1.xpose.msra.mxu0 0.0
    %1613 = vmatprep.subr.mxu0 0.0
    %1614 = vmatpush1.xpose.msra.mxu0 0.0
    %1615 = vmatprep.subr.mxu0 0.0
    %1616 = vmatpush1.xpose.msra.mxu0 0.0
    %1617 = vmatprep.subr.mxu0 0.0
    %1618 = vmatpush1.xpose.msra.mxu0 0.0
    %1619 = vmatprep.subr.mxu0 0.0
    %1620 = vmatpush1.xpose.msra.mxu0 0.0
    %1621 = vmatprep.subr.mxu0 0.0
    %1622 = vmatpush1.xpose.msra.mxu0 0.0
    %1623 = vmatprep.subr.mxu0 0.0
    %1624 = vmatpush1.xpose.msra.mxu0 0.0
    %1625 = vmatprep.subr.mxu0 0.0
    %1626 = vmatpush1.xpose.msra.mxu0 %v1593
    %1627 = vmatprep.subr.mxu0 0.0
    %1628 = vmatpush2.xpose.msra.mxu0 0.0
    %1629 = vmatprep.subr.mxu0 0.0
    %1630 = vmatpush2.xpose.msra.mxu0 0.0
    %1631 = vmatprep.subr.mxu0 0.0
    %1632 = vmatpush2.xpose.msra.mxu0 0.0
    %1633 = vmatprep.subr.mxu0 0.0
    %1634 = vmatpush2.xpose.msra.mxu0 0.0
    %1635 = vmatprep.subr.mxu0 0.0
    %1636 = vmatpush2.xpose.msra.mxu0 0.0
    %1637 = vmatprep.subr.mxu0 0.0
    %1638 = vmatpush2.xpose.msra.mxu0 0.0
    %1639 = vmatprep.subr.mxu0 0.0
    %1640 = vmatpush2.xpose.msra.mxu0 0.0
    %1641 = vmatprep.subr.mxu0 0.0
    %1642 = vmatpush2.xpose.msra.mxu0 0.0
    %1643 = vmatprep.subr.mxu0 0.0
    %1644 = vmatpush2.xpose.msra.mxu0 0.0
    %1645 = vmatprep.subr.mxu0 0.0
    %1646 = vmatpush2.xpose.msra.mxu0 0.0
    %1647 = vmatprep.subr.mxu0 0.0
    %1648 = vmatpush2.xpose.msra.mxu0 0.0
    %1649 = vmatprep.subr.mxu0 0.0
    %1650 = vmatpush2.xpose.msra.mxu0 0.0
    %1651 = vmatprep.subr.mxu0 0.0
    %1652 = vmatpush2.xpose.msra.mxu0 0.0
    %1653 = vmatprep.subr.mxu0 0.0
    %1654 = vmatpush2.xpose.msra.mxu0 0.0
    %1655 = vmatprep.subr.mxu0 0.0
    %1656 = vmatpush2.xpose.msra.mxu0 0.0
    %1657 = vmatprep.subr.mxu0 0.0
    %1658 = vmatpush2.xpose.msra.mxu0 0.0
    %1659 = vmatprep.mubr.f32.mxu0 0.0
    %1660 = vmatmul.mubr.f32.gmra.mxu0 %v1591
    %v1661 = vpop.f32.mrf.mxu0
    %v1662 = vadd.f32 0.0, %v1661
    %v1663 = vpop.f32.mrf.mxu0
    %1664 = vdwg.mxu0
    %1665 = vrot.lane.b32.xlu0 %v588, 80
    %v1666 = vpop.permute.xlu0 %1665
    %1667 = vrot.lane.b32.xlu0 %v588, 16
    %v1668 = vpop.permute.xlu0 %1667
    %v1669 = vsel %vm595, %v1666, 0
    %v1671 = vsel %vm595, %v1668, 0
    %1673 = vmatprep.subr.mxu0 0.0
    %1674 = vmatpush1.xpose.msra.mxu0 0.0
    %1675 = vmatprep.subr.mxu0 0.0
    %1676 = vmatpush1.xpose.msra.mxu0 0.0
    %1677 = vmatprep.subr.mxu0 0.0
    %1678 = vmatpush1.xpose.msra.mxu0 0.0
    %1679 = vmatprep.subr.mxu0 0.0
    %1680 = vmatpush1.xpose.msra.mxu0 0.0
    %1681 = vmatprep.subr.mxu0 0.0
    %1682 = vmatpush1.xpose.msra.mxu0 0.0
    %1683 = vmatprep.subr.mxu0 0.0
    %1684 = vmatpush1.xpose.msra.mxu0 0.0
    %1685 = vmatprep.subr.mxu0 0.0
    %1686 = vmatpush1.xpose.msra.mxu0 0.0
    %1687 = vmatprep.subr.mxu0 0.0
    %1688 = vmatpush1.xpose.msra.mxu0 0.0
    %1689 = vmatprep.subr.mxu0 0.0
    %1690 = vmatpush1.xpose.msra.mxu0 0.0
    %1691 = vmatprep.subr.mxu0 0.0
    %1692 = vmatpush1.xpose.msra.mxu0 0.0
    %1693 = vmatprep.subr.mxu0 0.0
    %1694 = vmatpush1.xpose.msra.mxu0 0.0
    %1695 = vmatprep.subr.mxu0 0.0
    %1696 = vmatpush1.xpose.msra.mxu0 0.0
    %1697 = vmatprep.subr.mxu0 0.0
    %1698 = vmatpush1.xpose.msra.mxu0 0.0
    %1699 = vmatprep.subr.mxu0 0.0
    %1700 = vmatpush1.xpose.msra.mxu0 0.0
    %1701 = vmatprep.subr.mxu0 0.0
    %1702 = vmatpush1.xpose.msra.mxu0 0.0
    %1703 = vmatprep.subr.mxu0 0.0
    %1704 = vmatpush1.xpose.msra.mxu0 %v1671
    %1705 = vmatprep.subr.mxu0 0.0
    %1706 = vmatpush2.xpose.msra.mxu0 0.0
    %1707 = vmatprep.subr.mxu0 0.0
    %1708 = vmatpush2.xpose.msra.mxu0 0.0
    %1709 = vmatprep.subr.mxu0 0.0
    %1710 = vmatpush2.xpose.msra.mxu0 0.0
    %1711 = vmatprep.subr.mxu0 0.0
    %1712 = vmatpush2.xpose.msra.mxu0 0.0
    %1713 = vmatprep.subr.mxu0 0.0
    %1714 = vmatpush2.xpose.msra.mxu0 0.0
    %1715 = vmatprep.subr.mxu0 0.0
    %1716 = vmatpush2.xpose.msra.mxu0 0.0
    %1717 = vmatprep.subr.mxu0 0.0
    %1718 = vmatpush2.xpose.msra.mxu0 0.0
    %1719 = vmatprep.subr.mxu0 0.0
    %1720 = vmatpush2.xpose.msra.mxu0 0.0
    %1721 = vmatprep.subr.mxu0 0.0
    %1722 = vmatpush2.xpose.msra.mxu0 0.0
    %1723 = vmatprep.subr.mxu0 0.0
    %1724 = vmatpush2.xpose.msra.mxu0 0.0
    %1725 = vmatprep.subr.mxu0 0.0
    %1726 = vmatpush2.xpose.msra.mxu0 0.0
    %1727 = vmatprep.subr.mxu0 0.0
    %1728 = vmatpush2.xpose.msra.mxu0 0.0
    %1729 = vmatprep.subr.mxu0 0.0
    %1730 = vmatpush2.xpose.msra.mxu0 0.0
    %1731 = vmatprep.subr.mxu0 0.0
    %1732 = vmatpush2.xpose.msra.mxu0 0.0
    %1733 = vmatprep.subr.mxu0 0.0
    %1734 = vmatpush2.xpose.msra.mxu0 0.0
    %1735 = vmatprep.subr.mxu0 0.0
    %1736 = vmatpush2.xpose.msra.mxu0 0.0
    %1737 = vmatprep.mubr.f32.mxu0 0.0
    %1738 = vmatmul.mubr.f32.gmra.mxu0 %v1669
    %v1739 = vpop.f32.mrf.mxu0
    %v1740 = vadd.f32 0.0, %v1739
    %v1741 = vpop.f32.mrf.mxu0
    %1742 = vdwg.mxu0
    %v1743 = vmul.f32 %v1662, 4.0
    %v1744 = vmul.f32 %v1740, 4.0
    %v1745 = vsel %vm749, %v1743, -inf
    %v1746 = vsel %vm749, %v1744, -inf
    %v1747 = vmax.f32 %v1745, %v1746
    %v1748 = vsub.f32 %v1743, %v1747
    %v1749 = vsub.f32 %v1744, %v1747
    %v1750 = vmul.f32 %v1748, 1.442695
    %v1751 = vpow.pop %v1750
    %v1752 = vmul.f32 %v1749, 1.442695
    %v1753 = vpow.pop %v1752
    %v1754 = vsel %vm749, %v1751, 0.0
    %v1755 = vsel %vm749, %v1753, 0.0
    %v1756 = vadd.f32 %v1754, %v1755
    %v1757 = vrcp.pop %v1756
    %v1758 = vmul.f32 %v1751, %v1757
    %v1759 = vmul.f32 %v1753, %v1757
    %1760 = vrot.lane.b32.xlu0 %v584, 80
    %v1761 = vpop.permute.xlu0 %1760
    %v1764 = vsel %vm749, %v1758, 0
    %1766 = vmatprep.subr.mxu0 0.0
    %1767 = vmatpush1.msra.mxu0 0.0
    %1768 = vmatprep.subr.mxu0 0.0
    %1769 = vmatpush1.msra.mxu0 0.0
    %1770 = vmatprep.subr.mxu0 0.0
    %1771 = vmatpush1.msra.mxu0 0.0
    %1772 = vmatprep.subr.mxu0 0.0
    %1773 = vmatpush1.msra.mxu0 0.0
    %1774 = vmatprep.subr.mxu0 0.0
    %1775 = vmatpush1.msra.mxu0 0.0
    %1776 = vmatprep.subr.mxu0 0.0
    %1777 = vmatpush1.msra.mxu0 0.0
    %1778 = vmatprep.subr.mxu0 0.0
    %1779 = vmatpush1.msra.mxu0 0.0
    %1780 = vmatprep.subr.mxu0 0.0
    %1781 = vmatpush1.msra.mxu0 0.0
    %1782 = vmatprep.subr.mxu0 0.0
    %1783 = vmatpush1.msra.mxu0 0.0
    %1784 = vmatprep.subr.mxu0 0.0
    %1785 = vmatpush1.msra.mxu0 0.0
    %1786 = vmatprep.subr.mxu0 0.0
    %1787 = vmatpush1.msra.mxu0 0.0
    %1788 = vmatprep.subr.mxu0 0.0
    %1789 = vmatpush1.msra.mxu0 0.0
    %1790 = vmatprep.subr.mxu0 0.0
    %1791 = vmatpush1.msra.mxu0 0.0
    %1792 = vmatprep.subr.mxu0 0.0
    %1793 = vmatpush1.msra.mxu0 0.0
    %1794 = vmatprep.subr.mxu0 0.0
    %1795 = vmatpush1.msra.mxu0 0.0
    %1796 = vmatprep.subr.mxu0 0.0
    %1797 = vmatpush1.msra.mxu0 %v1761
    %1798 = vmatprep.subr.mxu0 0.0
    %1799 = vmatpush2.msra.mxu0 0.0
    %1800 = vmatprep.subr.mxu0 0.0
    %1801 = vmatpush2.msra.mxu0 0.0
    %1802 = vmatprep.subr.mxu0 0.0
    %1803 = vmatpush2.msra.mxu0 0.0
    %1804 = vmatprep.subr.mxu0 0.0
    %1805 = vmatpush2.msra.mxu0 0.0
    %1806 = vmatprep.subr.mxu0 0.0
    %1807 = vmatpush2.msra.mxu0 0.0
    %1808 = vmatprep.subr.mxu0 0.0
    %1809 = vmatpush2.msra.mxu0 0.0
    %1810 = vmatprep.subr.mxu0 0.0
    %1811 = vmatpush2.msra.mxu0 0.0
    %1812 = vmatprep.subr.mxu0 0.0
    %1813 = vmatpush2.msra.mxu0 0.0
    %1814 = vmatprep.subr.mxu0 0.0
    %1815 = vmatpush2.msra.mxu0 0.0
    %1816 = vmatprep.subr.mxu0 0.0
    %1817 = vmatpush2.msra.mxu0 0.0
    %1818 = vmatprep.subr.mxu0 0.0
    %1819 = vmatpush2.msra.mxu0 0.0
    %1820 = vmatprep.subr.mxu0 0.0
    %1821 = vmatpush2.msra.mxu0 0.0
    %1822 = vmatprep.subr.mxu0 0.0
    %1823 = vmatpush2.msra.mxu0 0.0
    %1824 = vmatprep.subr.mxu0 0.0
    %1825 = vmatpush2.msra.mxu0 0.0
    %1826 = vmatprep.subr.mxu0 0.0
    %1827 = vmatpush2.msra.mxu0 0.0
    %1828 = vmatprep.subr.mxu0 0.0
    %1829 = vmatpush2.msra.mxu0 0.0
    %1830 = vmatprep.mubr.f32.mxu0 0.0
    %1831 = vmatmul.mubr.f32.gmra.mxu0 %v1764
    %v1832 = vpop.f32.mrf.mxu0
    %v1833 = vadd.f32 0.0, %v1832
    %v1834 = vpop.f32.mrf.mxu0
    %1835 = vdwg.mxu0
    %1836 = vrot.lane.b32.xlu0 %v590, 80
    %v1837 = vpop.permute.xlu0 %1836
    %v1840 = vsel %vm749, %v1759, 0
    %1842 = vmatprep.subr.mxu0 0.0
    %1843 = vmatpush1.msra.mxu0 0.0
    %1844 = vmatprep.subr.mxu0 0.0
    %1845 = vmatpush1.msra.mxu0 0.0
    %1846 = vmatprep.subr.mxu0 0.0
    %1847 = vmatpush1.msra.mxu0 0.0
    %1848 = vmatprep.subr.mxu0 0.0
    %1849 = vmatpush1.msra.mxu0 0.0
    %1850 = vmatprep.subr.mxu0 0.0
    %1851 = vmatpush1.msra.mxu0 0.0
    %1852 = vmatprep.subr.mxu0 0.0
    %1853 = vmatpush1.msra.mxu0 0.0
    %1854 = vmatprep.subr.mxu0 0.0
    %1855 = vmatpush1.msra.mxu0 0.0
    %1856 = vmatprep.subr.mxu0 0.0
    %1857 = vmatpush1.msra.mxu0 0.0
    %1858 = vmatprep.subr.mxu0 0.0
    %1859 = vmatpush1.msra.mxu0 0.0
    %1860 = vmatprep.subr.mxu0 0.0
    %1861 = vmatpush1.msra.mxu0 0.0
    %1862 = vmatprep.subr.mxu0 0.0
    %1863 = vmatpush1.msra.mxu0 0.0
    %1864 = vmatprep.subr.mxu0 0.0
    %1865 = vmatpush1.msra.mxu0 0.0
    %1866 = vmatprep.subr.mxu0 0.0
    %1867 = vmatpush1.msra.mxu0 0.0
    %1868 = vmatprep.subr.mxu0 0.0
    %1869 = vmatpush1.msra.mxu0 0.0
    %1870 = vmatprep.subr.mxu0 0.0
    %1871 = vmatpush1.msra.mxu0 0.0
    %1872 = vmatprep.subr.mxu0 0.0
    %1873 = vmatpush1.msra.mxu0 %v1837
    %1874 = vmatprep.subr.mxu0 0.0
    %1875 = vmatpush2.msra.mxu0 0.0
    %1876 = vmatprep.subr.mxu0 0.0
    %1877 = vmatpush2.msra.mxu0 0.0
    %1878 = vmatprep.subr.mxu0 0.0
    %1879 = vmatpush2.msra.mxu0 0.0
    %1880 = vmatprep.subr.mxu0 0.0
    %1881 = vmatpush2.msra.mxu0 0.0
    %1882 = vmatprep.subr.mxu0 0.0
    %1883 = vmatpush2.msra.mxu0 0.0
    %1884 = vmatprep.subr.mxu0 0.0
    %1885 = vmatpush2.msra.mxu0 0.0
    %1886 = vmatprep.subr.mxu0 0.0
    %1887 = vmatpush2.msra.mxu0 0.0
    %1888 = vmatprep.subr.mxu0 0.0
    %1889 = vmatpush2.msra.mxu0 0.0
    %1890 = vmatprep.subr.mxu0 0.0
    %1891 = vmatpush2.msra.mxu0 0.0
    %1892 = vmatprep.subr.mxu0 0.0
    %1893 = vmatpush2.msra.mxu0 0.0
    %1894 = vmatprep.subr.mxu0 0.0
    %1895 = vmatpush2.msra.mxu0 0.0
    %1896 = vmatprep.subr.mxu0 0.0
    %1897 = vmatpush2.msra.mxu0 0.0
    %1898 = vmatprep.subr.mxu0 0.0
    %1899 = vmatpush2.msra.mxu0 0.0
    %1900 = vmatprep.subr.mxu0 0.0
    %1901 = vmatpush2.msra.mxu0 0.0
    %1902 = vmatprep.subr.mxu0 0.0
    %1903 = vmatpush2.msra.mxu0 0.0
    %1904 = vmatprep.subr.mxu0 0.0
    %1905 = vmatpush2.msra.mxu0 0.0
    %1906 = vmatprep.mubr.f32.mxu0 0.0
    %1907 = vmatmul.mubr.f32.gmra.mxu0 %v1840
    %v1908 = vpop.f32.mrf.mxu0
    %v1909 = vadd.f32 0.0, %v1908
    %v1910 = vpop.f32.mrf.mxu0
    %1911 = vdwg.mxu0
    %1914 = vrot.lane.b32.xlu0 %v1833, 48
    %v1915 = vpop.permute.xlu0 %1914
    %1916 = vrot.lane.b32.xlu0 %v1909, 48
    %v1917 = vpop.permute.xlu0 %1916
    %vm1920 = vcmask 523648
    %1921 = vst.msk [vmem:[#allocation2] sm:$0xff] %vm1920, %v1915
    %1922 = vst.msk [vmem:[#allocation2 + $0x8] sm:$0xff] %vm1920, %v1917
    // Predicated region
    $region10: #{tpu_custom_call.1} parent=1 // pred_check
      _
    $region11: #{tpu_custom_call.1} parent=1 // pred_check_branch
      %1924 = sbr.rel (0) target = $region13
    $region12: #{tpu_custom_call.1} parent=1 // pred_region
      %s1926 = ssub.s32 256, 256
      %1927 = vsyncadd [#allocation3], %s1926
      %s1928 = sshll.u32 [#allocation2], 4
      %s1929 = int_to_ptr.vmem [resolvable:$true] %s1928
      %1934 = dma.vmem_to_hbm [thread:$0]  %s1929, 256, %s2, [#allocation3], 128, 128, 8
    $region13: #{tpu_custom_call.1} parent=1 // pred_fallthru
      _
    // Predicated region
    $region14: #{tpu_custom_call.1} parent=1 // pred_check
      _
    $region15: #{tpu_custom_call.1} parent=1 // pred_check_branch
      %1936 = sbr.rel (0) target = $region17
    $region16: #{tpu_custom_call.1} parent=1 // pred_region
      %1937 = dma.done [#allocation3], 256
    $region17: #{tpu_custom_call.1} parent=1 // pred_fallthru
      _
    %1938 = vsyncpa [#allocation3], 1

</llo_original>
